<compile_context>
chip_gen: v5e
topology: v5e:2x2
jax: 0.10.0
libtpu: 0.0.40
codegen_flags: <defaults>
</compile_context>

<pallas_src>
import functools

import jax
import jax.numpy as jnp
from jax.experimental import pallas as pl
from jax.experimental.pallas import tpu as pltpu


def _spatial_attention_kernel(x_ref, w_ref, cmask_ref, o_ref, *, K: int, H: int, W: int):
    # x_ref:     (1, C, H*W)  VMEM, lane-dense input block (one image)
    # w_ref:     (2*K*K,)     SMEM, f32; [0:K*K]=max-branch taps, [K*K:]=avg-branch taps / C
    # cmask_ref: (K, H*W)     VMEM, f32 0/1 column-validity mask per kw offset
    # o_ref:     (1, 1, H*W)  VMEM, lane-dense output block
    HW = H * W
    P = K // 2
    KK = K * K
    PADF = P * (W + 1)  # flat zero-pad so every tap offset stays inside the padded vector

    x = x_ref[0]                                                   # (C, HW)

    # Single pass over the input tile: channel max (native dtype) + channel sum (f32 acc).
    mp = jnp.max(x, axis=0, keepdims=True).astype(jnp.float32)     # (1, HW)
    ap = jnp.sum(x, axis=0, keepdims=True, dtype=jnp.float32)      # (1, HW)  (1/C folded into weights)

    # Zero-pad along the flattened (lane) axis: taps whose source row is outside the
    # image read these zeros; taps that wrap across a row are zeroed by cmask below.
    mp_p = jnp.pad(mp, ((0, 0), (PADF, PADF)))                     # (1, HW + 2*PADF)
    ap_p = jnp.pad(ap, ((0, 0), (PADF, PADF)))

    cm = cmask_ref[...]                                            # (K, HW)

    # Two independent accumulator chains (max / avg branch) + per-kw partial sums -> ILP.
    acc_mp = jnp.zeros((1, HW), jnp.float32)
    acc_ap = jnp.zeros((1, HW), jnp.float32)
    for kw in range(K):
        m = cm[kw:kw + 1, :]                                       # (1, HW) column mask for this kw
        s_mp = jnp.zeros((1, HW), jnp.float32)
        s_ap = jnp.zeros((1, HW), jnp.float32)
        for kh in range(K):
            d = PADF + (kh - P) * W + (kw - P)                     # static flat tap offset
            s_mp = s_mp + w_ref[kh * K + kw] * mp_p[:, d:d + HW]
            s_ap = s_ap + w_ref[KK + kh * K + kw] * ap_p[:, d:d + HW]
        acc_mp = acc_mp + m * s_mp
        acc_ap = acc_ap + m * s_ap

    o_ref[0] = jax.nn.sigmoid(acc_mp + acc_ap).astype(o_ref.dtype)


def spatial_attention(x: jax.Array, weight: jax.Array, *, kernel_size: int = 7) -> jax.Array:
    """x: (N, C, H, W); weight: (1, 2, K, K) (PyTorch OIHW, no bias). Returns (N, 1, H, W)."""
    assert kernel_size % 2 == 1, "Kernel size must be odd"
    N, C, H, W = x.shape
    K = kernel_size
    P = K // 2
    HW = H * W

    # Lane-dense views (free, host-side reshapes).
    x_flat = x.reshape(N, C, HW)

    # Flatten weights for SMEM; fold the 1/C of the mean pool into the avg-branch taps.
    w = weight.reshape(2, K, K).astype(jnp.float32)
    w_flat = jnp.concatenate([w[0].reshape(K * K), (w[1] / C).reshape(K * K)])   # (2*K*K,)

    # Per-kw column-validity masks for the flattened conv (kills row wrap-around taps).
    col = jnp.arange(HW, dtype=jnp.int32) % W
    cmask = jnp.stack(
        [((col + (kw - P) >= 0) & (col + (kw - P) < W)) for kw in range(K)]
    ).astype(jnp.float32)                                                         # (K, HW)

    kernel = functools.partial(_spatial_attention_kernel, K=K, H=H, W=W)
    out_flat = pl.pallas_call(
        kernel,
        out_shape=jax.ShapeDtypeStruct((N, 1, HW), x.dtype),
        grid_spec=pltpu.PrefetchScalarGridSpec(
            num_scalar_prefetch=0,
            grid=(N,),
            in_specs=[
                pl.BlockSpec((1, C, HW), lambda n: (n, 0, 0)),                 # lane-dense image block
                pl.BlockSpec(memory_space=pltpu.MemorySpace.SMEM),             # conv taps in SMEM
                pl.BlockSpec((K, HW), lambda n: (0, 0)),                       # column masks
            ],
            out_specs=pl.BlockSpec((1, 1, HW), lambda n: (n, 0, 0)),           # lane-dense output
        ),
        compiler_params=pltpu.CompilerParams(
            dimension_semantics=("parallel",),
            vmem_limit_bytes=32 * 1024 * 1024,   # v5e default scoped VMEM is only 16 MiB
        ),
    )(x_flat, w_flat, cmask)
    return out_flat.reshape(N, 1, H, W)


if __name__ == "__main__":
    key = jax.random.PRNGKey(0)
    kx, kw_key = jax.random.split(key)

    N, C, H, W = 2, 4, 16, 16
    K = 7

    x = jax.random.normal(kx, (N, C, H, W), dtype=jnp.float32)
    # Deterministic conv weight init (Kaiming-uniform-ish scale, no bias).
    fan_in = 2 * K * K
    bound = 1.0 / (fan_in ** 0.5)
    weight = jax.random.uniform(kw_key, (1, 2, K, K), jnp.float32, -bound, bound)

    out = spatial_attention(x, weight, kernel_size=K)
    out = jax.block_until_ready(out)

    # Pure-JAX reference for sanity.
    pooled = jnp.concatenate(
        [jnp.max(x, axis=1, keepdims=True), jnp.mean(x, axis=1, keepdims=True)], axis=1
    )
    ref = jax.nn.sigmoid(
        jax.lax.conv_general_dilated(
            pooled, weight, window_strides=(1, 1),
            padding=[(K // 2, K // 2), (K // 2, K // 2)],
            dimension_numbers=("NCHW", "OIHW", "NCHW"),
        )
    )
    assert out.shape == (N, 1, H, W)
    assert jnp.allclose(out, ref, atol=1e-5, rtol=1e-5)

    print("KERNEL_OK")
</pallas_src>

<mosaic_0001>
module attributes {stable_mosaic.version = 11 : i64} {
  func.func @_spatial_attention_kernel(%arg0: i32, %arg1: memref<1x4x256xf32, #tpu.memory_space<vmem>>, %arg2: memref<98xf32, #tpu.memory_space<smem>>, %arg3: memref<7x256xf32, #tpu.memory_space<vmem>>, %arg4: memref<1x1x256xf32, #tpu.memory_space<vmem>>) attributes {dimension_semantics = [#tpu.dimension_semantics<parallel>], iteration_bounds = array<i64: 2>, scalar_prefetch = 0 : i64, scratch_operands = 0 : i64, tpu.core_type = #tpu.core_type<tc>, window_params = [{transform_indices = @transform_0, window_bounds = array<i64: 1, 4, 256>}, {transform_indices = @transform_1, window_bounds = array<i64: 98>}, {pipeline_mode = #tpu.pipeline_mode<synchronous>, transform_indices = @transform_2, window_bounds = array<i64: 7, 256>}, {transform_indices = @transform_3, window_bounds = array<i64: 1, 1, 256>}]} {
    %c0 = arith.constant 0 : index
    %c0_0 = arith.constant 0 : index
    %c0_1 = arith.constant 0 : index
    %0 = vector.load %arg1[%c0, %c0_0, %c0_1] : memref<1x4x256xf32, #tpu.memory_space<vmem>>, vector<1x4x256xf32>
    %1 = vector.shape_cast %0 : vector<1x4x256xf32> to vector<4x256xf32>
    %cst = arith.constant dense<0xFF800000> : vector<256xf32>
    %2 = vector.multi_reduction <maximumf>, %1, %cst [0] : vector<4x256xf32> to vector<256xf32>
    %3 = vector.shape_cast %2 : vector<256xf32> to vector<1x256xf32>
    %cst_2 = arith.constant dense<0.000000e+00> : vector<256xf32>
    %4 = vector.multi_reduction <add>, %1, %cst_2 [0] : vector<4x256xf32> to vector<256xf32>
    %5 = vector.shape_cast %4 : vector<256xf32> to vector<1x256xf32>
    %c0_i32 = arith.constant 0 : i32
    %6 = arith.sitofp %c0_i32 : i32 to f32
    %7 = vector.broadcast %6 : f32 to vector<1x51xf32>
    %8 = tpu.concatenate %7, %3 in 1 : vector<1x51xf32>, vector<1x256xf32> -> vector<1x307xf32>
    %9 = vector.broadcast %6 : f32 to vector<1x51xf32>
    %10 = tpu.concatenate %8, %9 in 1 : vector<1x307xf32>, vector<1x51xf32> -> vector<1x358xf32>
    %c0_i32_3 = arith.constant 0 : i32
    %11 = arith.sitofp %c0_i32_3 : i32 to f32
    %12 = vector.broadcast %11 : f32 to vector<1x51xf32>
    %13 = tpu.concatenate %12, %5 in 1 : vector<1x51xf32>, vector<1x256xf32> -> vector<1x307xf32>
    %14 = vector.broadcast %11 : f32 to vector<1x51xf32>
    %15 = tpu.concatenate %13, %14 in 1 : vector<1x307xf32>, vector<1x51xf32> -> vector<1x358xf32>
    %c0_4 = arith.constant 0 : index
    %c0_5 = arith.constant 0 : index
    %16 = vector.load %arg3[%c0_4, %c0_5] : memref<7x256xf32, #tpu.memory_space<vmem>>, vector<7x256xf32>
    %cst_6 = arith.constant 0.000000e+00 : f32
    %17 = vector.broadcast %cst_6 : f32 to vector<1x256xf32>
    %cst_7 = arith.constant 0.000000e+00 : f32
    %18 = vector.broadcast %cst_7 : f32 to vector<1x256xf32>
    %19 = vector.extract_strided_slice %16 {offsets = [0, 0], sizes = [1, 256], strides = [1, 1]} : vector<7x256xf32> to vector<1x256xf32>
    %cst_8 = arith.constant 0.000000e+00 : f32
    %20 = vector.broadcast %cst_8 : f32 to vector<1x256xf32>
    %cst_9 = arith.constant 0.000000e+00 : f32
    %21 = vector.broadcast %cst_9 : f32 to vector<1x256xf32>
    %c0_10 = arith.constant 0 : index
    %22 = memref.load %arg2[%c0_10] : memref<98xf32, #tpu.memory_space<smem>>
    %23 = vector.extract_strided_slice %10 {offsets = [0, 0], sizes = [1, 256], strides = [1, 1]} : vector<1x358xf32> to vector<1x256xf32>
    %24 = vector.broadcast %22 : f32 to vector<1x256xf32>
    %25 = arith.mulf %24, %23 : vector<1x256xf32>
    %26 = arith.addf %20, %25 : vector<1x256xf32>
    %c49 = arith.constant 49 : index
    %27 = memref.load %arg2[%c49] : memref<98xf32, #tpu.memory_space<smem>>
    %28 = vector.extract_strided_slice %15 {offsets = [0, 0], sizes = [1, 256], strides = [1, 1]} : vector<1x358xf32> to vector<1x256xf32>
    %29 = vector.broadcast %27 : f32 to vector<1x256xf32>
    %30 = arith.mulf %29, %28 : vector<1x256xf32>
    %31 = arith.addf %21, %30 : vector<1x256xf32>
    %c7 = arith.constant 7 : index
    %32 = memref.load %arg2[%c7] : memref<98xf32, #tpu.memory_space<smem>>
    %33 = vector.extract_strided_slice %10 {offsets = [0, 16], sizes = [1, 256], strides = [1, 1]} : vector<1x358xf32> to vector<1x256xf32>
    %34 = vector.broadcast %32 : f32 to vector<1x256xf32>
    %35 = arith.mulf %34, %33 : vector<1x256xf32>
    %36 = arith.addf %26, %35 : vector<1x256xf32>
    %c56 = arith.constant 56 : index
    %37 = memref.load %arg2[%c56] : memref<98xf32, #tpu.memory_space<smem>>
    %38 = vector.extract_strided_slice %15 {offsets = [0, 16], sizes = [1, 256], strides = [1, 1]} : vector<1x358xf32> to vector<1x256xf32>
    %39 = vector.broadcast %37 : f32 to vector<1x256xf32>
    %40 = arith.mulf %39, %38 : vector<1x256xf32>
    %41 = arith.addf %31, %40 : vector<1x256xf32>
    %c14 = arith.constant 14 : index
    %42 = memref.load %arg2[%c14] : memref<98xf32, #tpu.memory_space<smem>>
    %43 = vector.extract_strided_slice %10 {offsets = [0, 32], sizes = [1, 256], strides = [1, 1]} : vector<1x358xf32> to vector<1x256xf32>
    %44 = vector.broadcast %42 : f32 to vector<1x256xf32>
    %45 = arith.mulf %44, %43 : vector<1x256xf32>
    %46 = arith.addf %36, %45 : vector<1x256xf32>
    %c63 = arith.constant 63 : index
    %47 = memref.load %arg2[%c63] : memref<98xf32, #tpu.memory_space<smem>>
    %48 = vector.extract_strided_slice %15 {offsets = [0, 32], sizes = [1, 256], strides = [1, 1]} : vector<1x358xf32> to vector<1x256xf32>
    %49 = vector.broadcast %47 : f32 to vector<1x256xf32>
    %50 = arith.mulf %49, %48 : vector<1x256xf32>
    %51 = arith.addf %41, %50 : vector<1x256xf32>
    %c21 = arith.constant 21 : index
    %52 = memref.load %arg2[%c21] : memref<98xf32, #tpu.memory_space<smem>>
    %53 = vector.extract_strided_slice %10 {offsets = [0, 48], sizes = [1, 256], strides = [1, 1]} : vector<1x358xf32> to vector<1x256xf32>
    %54 = vector.broadcast %52 : f32 to vector<1x256xf32>
    %55 = arith.mulf %54, %53 : vector<1x256xf32>
    %56 = arith.addf %46, %55 : vector<1x256xf32>
    %c70 = arith.constant 70 : index
    %57 = memref.load %arg2[%c70] : memref<98xf32, #tpu.memory_space<smem>>
    %58 = vector.extract_strided_slice %15 {offsets = [0, 48], sizes = [1, 256], strides = [1, 1]} : vector<1x358xf32> to vector<1x256xf32>
    %59 = vector.broadcast %57 : f32 to vector<1x256xf32>
    %60 = arith.mulf %59, %58 : vector<1x256xf32>
    %61 = arith.addf %51, %60 : vector<1x256xf32>
    %c28 = arith.constant 28 : index
    %62 = memref.load %arg2[%c28] : memref<98xf32, #tpu.memory_space<smem>>
    %63 = vector.extract_strided_slice %10 {offsets = [0, 64], sizes = [1, 256], strides = [1, 1]} : vector<1x358xf32> to vector<1x256xf32>
    %64 = vector.broadcast %62 : f32 to vector<1x256xf32>
    %65 = arith.mulf %64, %63 : vector<1x256xf32>
    %66 = arith.addf %56, %65 : vector<1x256xf32>
    %c77 = arith.constant 77 : index
    %67 = memref.load %arg2[%c77] : memref<98xf32, #tpu.memory_space<smem>>
    %68 = vector.extract_strided_slice %15 {offsets = [0, 64], sizes = [1, 256], strides = [1, 1]} : vector<1x358xf32> to vector<1x256xf32>
    %69 = vector.broadcast %67 : f32 to vector<1x256xf32>
    %70 = arith.mulf %69, %68 : vector<1x256xf32>
    %71 = arith.addf %61, %70 : vector<1x256xf32>
    %c35 = arith.constant 35 : index
    %72 = memref.load %arg2[%c35] : memref<98xf32, #tpu.memory_space<smem>>
    %73 = vector.extract_strided_slice %10 {offsets = [0, 80], sizes = [1, 256], strides = [1, 1]} : vector<1x358xf32> to vector<1x256xf32>
    %74 = vector.broadcast %72 : f32 to vector<1x256xf32>
    %75 = arith.mulf %74, %73 : vector<1x256xf32>
    %76 = arith.addf %66, %75 : vector<1x256xf32>
    %c84 = arith.constant 84 : index
    %77 = memref.load %arg2[%c84] : memref<98xf32, #tpu.memory_space<smem>>
    %78 = vector.extract_strided_slice %15 {offsets = [0, 80], sizes = [1, 256], strides = [1, 1]} : vector<1x358xf32> to vector<1x256xf32>
    %79 = vector.broadcast %77 : f32 to vector<1x256xf32>
    %80 = arith.mulf %79, %78 : vector<1x256xf32>
    %81 = arith.addf %71, %80 : vector<1x256xf32>
    %c42 = arith.constant 42 : index
    %82 = memref.load %arg2[%c42] : memref<98xf32, #tpu.memory_space<smem>>
    %83 = vector.extract_strided_slice %10 {offsets = [0, 96], sizes = [1, 256], strides = [1, 1]} : vector<1x358xf32> to vector<1x256xf32>
    %84 = vector.broadcast %82 : f32 to vector<1x256xf32>
    %85 = arith.mulf %84, %83 : vector<1x256xf32>
    %86 = arith.addf %76, %85 : vector<1x256xf32>
    %c91 = arith.constant 91 : index
    %87 = memref.load %arg2[%c91] : memref<98xf32, #tpu.memory_space<smem>>
    %88 = vector.extract_strided_slice %15 {offsets = [0, 96], sizes = [1, 256], strides = [1, 1]} : vector<1x358xf32> to vector<1x256xf32>
    %89 = vector.broadcast %87 : f32 to vector<1x256xf32>
    %90 = arith.mulf %89, %88 : vector<1x256xf32>
    %91 = arith.addf %81, %90 : vector<1x256xf32>
    %92 = arith.mulf %19, %86 : vector<1x256xf32>
    %93 = arith.addf %17, %92 : vector<1x256xf32>
    %94 = arith.mulf %19, %91 : vector<1x256xf32>
    %95 = arith.addf %18, %94 : vector<1x256xf32>
    %96 = vector.extract_strided_slice %16 {offsets = [1, 0], sizes = [1, 256], strides = [1, 1]} : vector<7x256xf32> to vector<1x256xf32>
    %cst_11 = arith.constant 0.000000e+00 : f32
    %97 = vector.broadcast %cst_11 : f32 to vector<1x256xf32>
    %cst_12 = arith.constant 0.000000e+00 : f32
    %98 = vector.broadcast %cst_12 : f32 to vector<1x256xf32>
    %c1 = arith.constant 1 : index
    %99 = memref.load %arg2[%c1] : memref<98xf32, #tpu.memory_space<smem>>
    %100 = vector.extract_strided_slice %10 {offsets = [0, 1], sizes = [1, 256], strides = [1, 1]} : vector<1x358xf32> to vector<1x256xf32>
    %101 = vector.broadcast %99 : f32 to vector<1x256xf32>
    %102 = arith.mulf %101, %100 : vector<1x256xf32>
    %103 = arith.addf %97, %102 : vector<1x256xf32>
    %c50 = arith.constant 50 : index
    %104 = memref.load %arg2[%c50] : memref<98xf32, #tpu.memory_space<smem>>
    %105 = vector.extract_strided_slice %15 {offsets = [0, 1], sizes = [1, 256], strides = [1, 1]} : vector<1x358xf32> to vector<1x256xf32>
    %106 = vector.broadcast %104 : f32 to vector<1x256xf32>
    %107 = arith.mulf %106, %105 : vector<1x256xf32>
    %108 = arith.addf %98, %107 : vector<1x256xf32>
    %c8 = arith.constant 8 : index
    %109 = memref.load %arg2[%c8] : memref<98xf32, #tpu.memory_space<smem>>
    %110 = vector.extract_strided_slice %10 {offsets = [0, 17], sizes = [1, 256], strides = [1, 1]} : vector<1x358xf32> to vector<1x256xf32>
    %111 = vector.broadcast %109 : f32 to vector<1x256xf32>
    %112 = arith.mulf %111, %110 : vector<1x256xf32>
    %113 = arith.addf %103, %112 : vector<1x256xf32>
    %c57 = arith.constant 57 : index
    %114 = memref.load %arg2[%c57] : memref<98xf32, #tpu.memory_space<smem>>
    %115 = vector.extract_strided_slice %15 {offsets = [0, 17], sizes = [1, 256], strides = [1, 1]} : vector<1x358xf32> to vector<1x256xf32>
    %116 = vector.broadcast %114 : f32 to vector<1x256xf32>
    %117 = arith.mulf %116, %115 : vector<1x256xf32>
    %118 = arith.addf %108, %117 : vector<1x256xf32>
    %c15 = arith.constant 15 : index
    %119 = memref.load %arg2[%c15] : memref<98xf32, #tpu.memory_space<smem>>
    %120 = vector.extract_strided_slice %10 {offsets = [0, 33], sizes = [1, 256], strides = [1, 1]} : vector<1x358xf32> to vector<1x256xf32>
    %121 = vector.broadcast %119 : f32 to vector<1x256xf32>
    %122 = arith.mulf %121, %120 : vector<1x256xf32>
    %123 = arith.addf %113, %122 : vector<1x256xf32>
    %c64 = arith.constant 64 : index
    %124 = memref.load %arg2[%c64] : memref<98xf32, #tpu.memory_space<smem>>
    %125 = vector.extract_strided_slice %15 {offsets = [0, 33], sizes = [1, 256], strides = [1, 1]} : vector<1x358xf32> to vector<1x256xf32>
    %126 = vector.broadcast %124 : f32 to vector<1x256xf32>
    %127 = arith.mulf %126, %125 : vector<1x256xf32>
    %128 = arith.addf %118, %127 : vector<1x256xf32>
    %c22 = arith.constant 22 : index
    %129 = memref.load %arg2[%c22] : memref<98xf32, #tpu.memory_space<smem>>
    %130 = vector.extract_strided_slice %10 {offsets = [0, 49], sizes = [1, 256], strides = [1, 1]} : vector<1x358xf32> to vector<1x256xf32>
    %131 = vector.broadcast %129 : f32 to vector<1x256xf32>
    %132 = arith.mulf %131, %130 : vector<1x256xf32>
    %133 = arith.addf %123, %132 : vector<1x256xf32>
    %c71 = arith.constant 71 : index
    %134 = memref.load %arg2[%c71] : memref<98xf32, #tpu.memory_space<smem>>
    %135 = vector.extract_strided_slice %15 {offsets = [0, 49], sizes = [1, 256], strides = [1, 1]} : vector<1x358xf32> to vector<1x256xf32>
    %136 = vector.broadcast %134 : f32 to vector<1x256xf32>
    %137 = arith.mulf %136, %135 : vector<1x256xf32>
    %138 = arith.addf %128, %137 : vector<1x256xf32>
    %c29 = arith.constant 29 : index
    %139 = memref.load %arg2[%c29] : memref<98xf32, #tpu.memory_space<smem>>
    %140 = vector.extract_strided_slice %10 {offsets = [0, 65], sizes = [1, 256], strides = [1, 1]} : vector<1x358xf32> to vector<1x256xf32>
    %141 = vector.broadcast %139 : f32 to vector<1x256xf32>
    %142 = arith.mulf %141, %140 : vector<1x256xf32>
    %143 = arith.addf %133, %142 : vector<1x256xf32>
    %c78 = arith.constant 78 : index
    %144 = memref.load %arg2[%c78] : memref<98xf32, #tpu.memory_space<smem>>
    %145 = vector.extract_strided_slice %15 {offsets = [0, 65], sizes = [1, 256], strides = [1, 1]} : vector<1x358xf32> to vector<1x256xf32>
    %146 = vector.broadcast %144 : f32 to vector<1x256xf32>
    %147 = arith.mulf %146, %145 : vector<1x256xf32>
    %148 = arith.addf %138, %147 : vector<1x256xf32>
    %c36 = arith.constant 36 : index
    %149 = memref.load %arg2[%c36] : memref<98xf32, #tpu.memory_space<smem>>
    %150 = vector.extract_strided_slice %10 {offsets = [0, 81], sizes = [1, 256], strides = [1, 1]} : vector<1x358xf32> to vector<1x256xf32>
    %151 = vector.broadcast %149 : f32 to vector<1x256xf32>
    %152 = arith.mulf %151, %150 : vector<1x256xf32>
    %153 = arith.addf %143, %152 : vector<1x256xf32>
    %c85 = arith.constant 85 : index
    %154 = memref.load %arg2[%c85] : memref<98xf32, #tpu.memory_space<smem>>
    %155 = vector.extract_strided_slice %15 {offsets = [0, 81], sizes = [1, 256], strides = [1, 1]} : vector<1x358xf32> to vector<1x256xf32>
    %156 = vector.broadcast %154 : f32 to vector<1x256xf32>
    %157 = arith.mulf %156, %155 : vector<1x256xf32>
    %158 = arith.addf %148, %157 : vector<1x256xf32>
    %c43 = arith.constant 43 : index
    %159 = memref.load %arg2[%c43] : memref<98xf32, #tpu.memory_space<smem>>
    %160 = vector.extract_strided_slice %10 {offsets = [0, 97], sizes = [1, 256], strides = [1, 1]} : vector<1x358xf32> to vector<1x256xf32>
    %161 = vector.broadcast %159 : f32 to vector<1x256xf32>
    %162 = arith.mulf %161, %160 : vector<1x256xf32>
    %163 = arith.addf %153, %162 : vector<1x256xf32>
    %c92 = arith.constant 92 : index
    %164 = memref.load %arg2[%c92] : memref<98xf32, #tpu.memory_space<smem>>
    %165 = vector.extract_strided_slice %15 {offsets = [0, 97], sizes = [1, 256], strides = [1, 1]} : vector<1x358xf32> to vector<1x256xf32>
    %166 = vector.broadcast %164 : f32 to vector<1x256xf32>
    %167 = arith.mulf %166, %165 : vector<1x256xf32>
    %168 = arith.addf %158, %167 : vector<1x256xf32>
    %169 = arith.mulf %96, %163 : vector<1x256xf32>
    %170 = arith.addf %93, %169 : vector<1x256xf32>
    %171 = arith.mulf %96, %168 : vector<1x256xf32>
    %172 = arith.addf %95, %171 : vector<1x256xf32>
    %173 = vector.extract_strided_slice %16 {offsets = [2, 0], sizes = [1, 256], strides = [1, 1]} : vector<7x256xf32> to vector<1x256xf32>
    %cst_13 = arith.constant 0.000000e+00 : f32
    %174 = vector.broadcast %cst_13 : f32 to vector<1x256xf32>
    %cst_14 = arith.constant 0.000000e+00 : f32
    %175 = vector.broadcast %cst_14 : f32 to vector<1x256xf32>
    %c2 = arith.constant 2 : index
    %176 = memref.load %arg2[%c2] : memref<98xf32, #tpu.memory_space<smem>>
    %177 = vector.extract_strided_slice %10 {offsets = [0, 2], sizes = [1, 256], strides = [1, 1]} : vector<1x358xf32> to vector<1x256xf32>
    %178 = vector.broadcast %176 : f32 to vector<1x256xf32>
    %179 = arith.mulf %178, %177 : vector<1x256xf32>
    %180 = arith.addf %174, %179 : vector<1x256xf32>
    %c51 = arith.constant 51 : index
    %181 = memref.load %arg2[%c51] : memref<98xf32, #tpu.memory_space<smem>>
    %182 = vector.extract_strided_slice %15 {offsets = [0, 2], sizes = [1, 256], strides = [1, 1]} : vector<1x358xf32> to vector<1x256xf32>
    %183 = vector.broadcast %181 : f32 to vector<1x256xf32>
    %184 = arith.mulf %183, %182 : vector<1x256xf32>
    %185 = arith.addf %175, %184 : vector<1x256xf32>
    %c9 = arith.constant 9 : index
    %186 = memref.load %arg2[%c9] : memref<98xf32, #tpu.memory_space<smem>>
    %187 = vector.extract_strided_slice %10 {offsets = [0, 18], sizes = [1, 256], strides = [1, 1]} : vector<1x358xf32> to vector<1x256xf32>
    %188 = vector.broadcast %186 : f32 to vector<1x256xf32>
    %189 = arith.mulf %188, %187 : vector<1x256xf32>
    %190 = arith.addf %180, %189 : vector<1x256xf32>
    %c58 = arith.constant 58 : index
    %191 = memref.load %arg2[%c58] : memref<98xf32, #tpu.memory_space<smem>>
    %192 = vector.extract_strided_slice %15 {offsets = [0, 18], sizes = [1, 256], strides = [1, 1]} : vector<1x358xf32> to vector<1x256xf32>
    %193 = vector.broadcast %191 : f32 to vector<1x256xf32>
    %194 = arith.mulf %193, %192 : vector<1x256xf32>
    %195 = arith.addf %185, %194 : vector<1x256xf32>
    %c16 = arith.constant 16 : index
    %196 = memref.load %arg2[%c16] : memref<98xf32, #tpu.memory_space<smem>>
    %197 = vector.extract_strided_slice %10 {offsets = [0, 34], sizes = [1, 256], strides = [1, 1]} : vector<1x358xf32> to vector<1x256xf32>
    %198 = vector.broadcast %196 : f32 to vector<1x256xf32>
    %199 = arith.mulf %198, %197 : vector<1x256xf32>
    %200 = arith.addf %190, %199 : vector<1x256xf32>
    %c65 = arith.constant 65 : index
    %201 = memref.load %arg2[%c65] : memref<98xf32, #tpu.memory_space<smem>>
    %202 = vector.extract_strided_slice %15 {offsets = [0, 34], sizes = [1, 256], strides = [1, 1]} : vector<1x358xf32> to vector<1x256xf32>
    %203 = vector.broadcast %201 : f32 to vector<1x256xf32>
    %204 = arith.mulf %203, %202 : vector<1x256xf32>
    %205 = arith.addf %195, %204 : vector<1x256xf32>
    %c23 = arith.constant 23 : index
    %206 = memref.load %arg2[%c23] : memref<98xf32, #tpu.memory_space<smem>>
    %207 = vector.extract_strided_slice %10 {offsets = [0, 50], sizes = [1, 256], strides = [1, 1]} : vector<1x358xf32> to vector<1x256xf32>
    %208 = vector.broadcast %206 : f32 to vector<1x256xf32>
    %209 = arith.mulf %208, %207 : vector<1x256xf32>
    %210 = arith.addf %200, %209 : vector<1x256xf32>
    %c72 = arith.constant 72 : index
    %211 = memref.load %arg2[%c72] : memref<98xf32, #tpu.memory_space<smem>>
    %212 = vector.extract_strided_slice %15 {offsets = [0, 50], sizes = [1, 256], strides = [1, 1]} : vector<1x358xf32> to vector<1x256xf32>
    %213 = vector.broadcast %211 : f32 to vector<1x256xf32>
    %214 = arith.mulf %213, %212 : vector<1x256xf32>
    %215 = arith.addf %205, %214 : vector<1x256xf32>
    %c30 = arith.constant 30 : index
    %216 = memref.load %arg2[%c30] : memref<98xf32, #tpu.memory_space<smem>>
    %217 = vector.extract_strided_slice %10 {offsets = [0, 66], sizes = [1, 256], strides = [1, 1]} : vector<1x358xf32> to vector<1x256xf32>
    %218 = vector.broadcast %216 : f32 to vector<1x256xf32>
    %219 = arith.mulf %218, %217 : vector<1x256xf32>
    %220 = arith.addf %210, %219 : vector<1x256xf32>
    %c79 = arith.constant 79 : index
    %221 = memref.load %arg2[%c79] : memref<98xf32, #tpu.memory_space<smem>>
    %222 = vector.extract_strided_slice %15 {offsets = [0, 66], sizes = [1, 256], strides = [1, 1]} : vector<1x358xf32> to vector<1x256xf32>
    %223 = vector.broadcast %221 : f32 to vector<1x256xf32>
    %224 = arith.mulf %223, %222 : vector<1x256xf32>
    %225 = arith.addf %215, %224 : vector<1x256xf32>
    %c37 = arith.constant 37 : index
    %226 = memref.load %arg2[%c37] : memref<98xf32, #tpu.memory_space<smem>>
    %227 = vector.extract_strided_slice %10 {offsets = [0, 82], sizes = [1, 256], strides = [1, 1]} : vector<1x358xf32> to vector<1x256xf32>
    %228 = vector.broadcast %226 : f32 to vector<1x256xf32>
    %229 = arith.mulf %228, %227 : vector<1x256xf32>
    %230 = arith.addf %220, %229 : vector<1x256xf32>
    %c86 = arith.constant 86 : index
    %231 = memref.load %arg2[%c86] : memref<98xf32, #tpu.memory_space<smem>>
    %232 = vector.extract_strided_slice %15 {offsets = [0, 82], sizes = [1, 256], strides = [1, 1]} : vector<1x358xf32> to vector<1x256xf32>
    %233 = vector.broadcast %231 : f32 to vector<1x256xf32>
    %234 = arith.mulf %233, %232 : vector<1x256xf32>
    %235 = arith.addf %225, %234 : vector<1x256xf32>
    %c44 = arith.constant 44 : index
    %236 = memref.load %arg2[%c44] : memref<98xf32, #tpu.memory_space<smem>>
    %237 = vector.extract_strided_slice %10 {offsets = [0, 98], sizes = [1, 256], strides = [1, 1]} : vector<1x358xf32> to vector<1x256xf32>
    %238 = vector.broadcast %236 : f32 to vector<1x256xf32>
    %239 = arith.mulf %238, %237 : vector<1x256xf32>
    %240 = arith.addf %230, %239 : vector<1x256xf32>
    %c93 = arith.constant 93 : index
    %241 = memref.load %arg2[%c93] : memref<98xf32, #tpu.memory_space<smem>>
    %242 = vector.extract_strided_slice %15 {offsets = [0, 98], sizes = [1, 256], strides = [1, 1]} : vector<1x358xf32> to vector<1x256xf32>
    %243 = vector.broadcast %241 : f32 to vector<1x256xf32>
    %244 = arith.mulf %243, %242 : vector<1x256xf32>
    %245 = arith.addf %235, %244 : vector<1x256xf32>
    %246 = arith.mulf %173, %240 : vector<1x256xf32>
    %247 = arith.addf %170, %246 : vector<1x256xf32>
    %248 = arith.mulf %173, %245 : vector<1x256xf32>
    %249 = arith.addf %172, %248 : vector<1x256xf32>
    %250 = vector.extract_strided_slice %16 {offsets = [3, 0], sizes = [1, 256], strides = [1, 1]} : vector<7x256xf32> to vector<1x256xf32>
    %cst_15 = arith.constant 0.000000e+00 : f32
    %251 = vector.broadcast %cst_15 : f32 to vector<1x256xf32>
    %cst_16 = arith.constant 0.000000e+00 : f32
    %252 = vector.broadcast %cst_16 : f32 to vector<1x256xf32>
    %c3 = arith.constant 3 : index
    %253 = memref.load %arg2[%c3] : memref<98xf32, #tpu.memory_space<smem>>
    %254 = vector.extract_strided_slice %10 {offsets = [0, 3], sizes = [1, 256], strides = [1, 1]} : vector<1x358xf32> to vector<1x256xf32>
    %255 = vector.broadcast %253 : f32 to vector<1x256xf32>
    %256 = arith.mulf %255, %254 : vector<1x256xf32>
    %257 = arith.addf %251, %256 : vector<1x256xf32>
    %c52 = arith.constant 52 : index
    %258 = memref.load %arg2[%c52] : memref<98xf32, #tpu.memory_space<smem>>
    %259 = vector.extract_strided_slice %15 {offsets = [0, 3], sizes = [1, 256], strides = [1, 1]} : vector<1x358xf32> to vector<1x256xf32>
    %260 = vector.broadcast %258 : f32 to vector<1x256xf32>
    %261 = arith.mulf %260, %259 : vector<1x256xf32>
    %262 = arith.addf %252, %261 : vector<1x256xf32>
    %c10 = arith.constant 10 : index
    %263 = memref.load %arg2[%c10] : memref<98xf32, #tpu.memory_space<smem>>
    %264 = vector.extract_strided_slice %10 {offsets = [0, 19], sizes = [1, 256], strides = [1, 1]} : vector<1x358xf32> to vector<1x256xf32>
    %265 = vector.broadcast %263 : f32 to vector<1x256xf32>
    %266 = arith.mulf %265, %264 : vector<1x256xf32>
    %267 = arith.addf %257, %266 : vector<1x256xf32>
    %c59 = arith.constant 59 : index
    %268 = memref.load %arg2[%c59] : memref<98xf32, #tpu.memory_space<smem>>
    %269 = vector.extract_strided_slice %15 {offsets = [0, 19], sizes = [1, 256], strides = [1, 1]} : vector<1x358xf32> to vector<1x256xf32>
    %270 = vector.broadcast %268 : f32 to vector<1x256xf32>
    %271 = arith.mulf %270, %269 : vector<1x256xf32>
    %272 = arith.addf %262, %271 : vector<1x256xf32>
    %c17 = arith.constant 17 : index
    %273 = memref.load %arg2[%c17] : memref<98xf32, #tpu.memory_space<smem>>
    %274 = vector.extract_strided_slice %10 {offsets = [0, 35], sizes = [1, 256], strides = [1, 1]} : vector<1x358xf32> to vector<1x256xf32>
    %275 = vector.broadcast %273 : f32 to vector<1x256xf32>
    %276 = arith.mulf %275, %274 : vector<1x256xf32>
    %277 = arith.addf %267, %276 : vector<1x256xf32>
    %c66 = arith.constant 66 : index
    %278 = memref.load %arg2[%c66] : memref<98xf32, #tpu.memory_space<smem>>
    %279 = vector.extract_strided_slice %15 {offsets = [0, 35], sizes = [1, 256], strides = [1, 1]} : vector<1x358xf32> to vector<1x256xf32>
    %280 = vector.broadcast %278 : f32 to vector<1x256xf32>
    %281 = arith.mulf %280, %279 : vector<1x256xf32>
    %282 = arith.addf %272, %281 : vector<1x256xf32>
    %c24 = arith.constant 24 : index
    %283 = memref.load %arg2[%c24] : memref<98xf32, #tpu.memory_space<smem>>
    %284 = vector.extract_strided_slice %10 {offsets = [0, 51], sizes = [1, 256], strides = [1, 1]} : vector<1x358xf32> to vector<1x256xf32>
    %285 = vector.broadcast %283 : f32 to vector<1x256xf32>
    %286 = arith.mulf %285, %284 : vector<1x256xf32>
    %287 = arith.addf %277, %286 : vector<1x256xf32>
    %c73 = arith.constant 73 : index
    %288 = memref.load %arg2[%c73] : memref<98xf32, #tpu.memory_space<smem>>
    %289 = vector.extract_strided_slice %15 {offsets = [0, 51], sizes = [1, 256], strides = [1, 1]} : vector<1x358xf32> to vector<1x256xf32>
    %290 = vector.broadcast %288 : f32 to vector<1x256xf32>
    %291 = arith.mulf %290, %289 : vector<1x256xf32>
    %292 = arith.addf %282, %291 : vector<1x256xf32>
    %c31 = arith.constant 31 : index
    %293 = memref.load %arg2[%c31] : memref<98xf32, #tpu.memory_space<smem>>
    %294 = vector.extract_strided_slice %10 {offsets = [0, 67], sizes = [1, 256], strides = [1, 1]} : vector<1x358xf32> to vector<1x256xf32>
    %295 = vector.broadcast %293 : f32 to vector<1x256xf32>
    %296 = arith.mulf %295, %294 : vector<1x256xf32>
    %297 = arith.addf %287, %296 : vector<1x256xf32>
    %c80 = arith.constant 80 : index
    %298 = memref.load %arg2[%c80] : memref<98xf32, #tpu.memory_space<smem>>
    %299 = vector.extract_strided_slice %15 {offsets = [0, 67], sizes = [1, 256], strides = [1, 1]} : vector<1x358xf32> to vector<1x256xf32>
    %300 = vector.broadcast %298 : f32 to vector<1x256xf32>
    %301 = arith.mulf %300, %299 : vector<1x256xf32>
    %302 = arith.addf %292, %301 : vector<1x256xf32>
    %c38 = arith.constant 38 : index
    %303 = memref.load %arg2[%c38] : memref<98xf32, #tpu.memory_space<smem>>
    %304 = vector.extract_strided_slice %10 {offsets = [0, 83], sizes = [1, 256], strides = [1, 1]} : vector<1x358xf32> to vector<1x256xf32>
    %305 = vector.broadcast %303 : f32 to vector<1x256xf32>
    %306 = arith.mulf %305, %304 : vector<1x256xf32>
    %307 = arith.addf %297, %306 : vector<1x256xf32>
    %c87 = arith.constant 87 : index
    %308 = memref.load %arg2[%c87] : memref<98xf32, #tpu.memory_space<smem>>
    %309 = vector.extract_strided_slice %15 {offsets = [0, 83], sizes = [1, 256], strides = [1, 1]} : vector<1x358xf32> to vector<1x256xf32>
    %310 = vector.broadcast %308 : f32 to vector<1x256xf32>
    %311 = arith.mulf %310, %309 : vector<1x256xf32>
    %312 = arith.addf %302, %311 : vector<1x256xf32>
    %c45 = arith.constant 45 : index
    %313 = memref.load %arg2[%c45] : memref<98xf32, #tpu.memory_space<smem>>
    %314 = vector.extract_strided_slice %10 {offsets = [0, 99], sizes = [1, 256], strides = [1, 1]} : vector<1x358xf32> to vector<1x256xf32>
    %315 = vector.broadcast %313 : f32 to vector<1x256xf32>
    %316 = arith.mulf %315, %314 : vector<1x256xf32>
    %317 = arith.addf %307, %316 : vector<1x256xf32>
    %c94 = arith.constant 94 : index
    %318 = memref.load %arg2[%c94] : memref<98xf32, #tpu.memory_space<smem>>
    %319 = vector.extract_strided_slice %15 {offsets = [0, 99], sizes = [1, 256], strides = [1, 1]} : vector<1x358xf32> to vector<1x256xf32>
    %320 = vector.broadcast %318 : f32 to vector<1x256xf32>
    %321 = arith.mulf %320, %319 : vector<1x256xf32>
    %322 = arith.addf %312, %321 : vector<1x256xf32>
    %323 = arith.mulf %250, %317 : vector<1x256xf32>
    %324 = arith.addf %247, %323 : vector<1x256xf32>
    %325 = arith.mulf %250, %322 : vector<1x256xf32>
    %326 = arith.addf %249, %325 : vector<1x256xf32>
    %327 = vector.extract_strided_slice %16 {offsets = [4, 0], sizes = [1, 256], strides = [1, 1]} : vector<7x256xf32> to vector<1x256xf32>
    %cst_17 = arith.constant 0.000000e+00 : f32
    %328 = vector.broadcast %cst_17 : f32 to vector<1x256xf32>
    %cst_18 = arith.constant 0.000000e+00 : f32
    %329 = vector.broadcast %cst_18 : f32 to vector<1x256xf32>
    %c4 = arith.constant 4 : index
    %330 = memref.load %arg2[%c4] : memref<98xf32, #tpu.memory_space<smem>>
    %331 = vector.extract_strided_slice %10 {offsets = [0, 4], sizes = [1, 256], strides = [1, 1]} : vector<1x358xf32> to vector<1x256xf32>
    %332 = vector.broadcast %330 : f32 to vector<1x256xf32>
    %333 = arith.mulf %332, %331 : vector<1x256xf32>
    %334 = arith.addf %328, %333 : vector<1x256xf32>
    %c53 = arith.constant 53 : index
    %335 = memref.load %arg2[%c53] : memref<98xf32, #tpu.memory_space<smem>>
    %336 = vector.extract_strided_slice %15 {offsets = [0, 4], sizes = [1, 256], strides = [1, 1]} : vector<1x358xf32> to vector<1x256xf32>
    %337 = vector.broadcast %335 : f32 to vector<1x256xf32>
    %338 = arith.mulf %337, %336 : vector<1x256xf32>
    %339 = arith.addf %329, %338 : vector<1x256xf32>
    %c11 = arith.constant 11 : index
    %340 = memref.load %arg2[%c11] : memref<98xf32, #tpu.memory_space<smem>>
    %341 = vector.extract_strided_slice %10 {offsets = [0, 20], sizes = [1, 256], strides = [1, 1]} : vector<1x358xf32> to vector<1x256xf32>
    %342 = vector.broadcast %340 : f32 to vector<1x256xf32>
    %343 = arith.mulf %342, %341 : vector<1x256xf32>
    %344 = arith.addf %334, %343 : vector<1x256xf32>
    %c60 = arith.constant 60 : index
    %345 = memref.load %arg2[%c60] : memref<98xf32, #tpu.memory_space<smem>>
    %346 = vector.extract_strided_slice %15 {offsets = [0, 20], sizes = [1, 256], strides = [1, 1]} : vector<1x358xf32> to vector<1x256xf32>
    %347 = vector.broadcast %345 : f32 to vector<1x256xf32>
    %348 = arith.mulf %347, %346 : vector<1x256xf32>
    %349 = arith.addf %339, %348 : vector<1x256xf32>
    %c18 = arith.constant 18 : index
    %350 = memref.load %arg2[%c18] : memref<98xf32, #tpu.memory_space<smem>>
    %351 = vector.extract_strided_slice %10 {offsets = [0, 36], sizes = [1, 256], strides = [1, 1]} : vector<1x358xf32> to vector<1x256xf32>
    %352 = vector.broadcast %350 : f32 to vector<1x256xf32>
    %353 = arith.mulf %352, %351 : vector<1x256xf32>
    %354 = arith.addf %344, %353 : vector<1x256xf32>
    %c67 = arith.constant 67 : index
    %355 = memref.load %arg2[%c67] : memref<98xf32, #tpu.memory_space<smem>>
    %356 = vector.extract_strided_slice %15 {offsets = [0, 36], sizes = [1, 256], strides = [1, 1]} : vector<1x358xf32> to vector<1x256xf32>
    %357 = vector.broadcast %355 : f32 to vector<1x256xf32>
    %358 = arith.mulf %357, %356 : vector<1x256xf32>
    %359 = arith.addf %349, %358 : vector<1x256xf32>
    %c25 = arith.constant 25 : index
    %360 = memref.load %arg2[%c25] : memref<98xf32, #tpu.memory_space<smem>>
    %361 = vector.extract_strided_slice %10 {offsets = [0, 52], sizes = [1, 256], strides = [1, 1]} : vector<1x358xf32> to vector<1x256xf32>
    %362 = vector.broadcast %360 : f32 to vector<1x256xf32>
    %363 = arith.mulf %362, %361 : vector<1x256xf32>
    %364 = arith.addf %354, %363 : vector<1x256xf32>
    %c74 = arith.constant 74 : index
    %365 = memref.load %arg2[%c74] : memref<98xf32, #tpu.memory_space<smem>>
    %366 = vector.extract_strided_slice %15 {offsets = [0, 52], sizes = [1, 256], strides = [1, 1]} : vector<1x358xf32> to vector<1x256xf32>
    %367 = vector.broadcast %365 : f32 to vector<1x256xf32>
    %368 = arith.mulf %367, %366 : vector<1x256xf32>
    %369 = arith.addf %359, %368 : vector<1x256xf32>
    %c32 = arith.constant 32 : index
    %370 = memref.load %arg2[%c32] : memref<98xf32, #tpu.memory_space<smem>>
    %371 = vector.extract_strided_slice %10 {offsets = [0, 68], sizes = [1, 256], strides = [1, 1]} : vector<1x358xf32> to vector<1x256xf32>
    %372 = vector.broadcast %370 : f32 to vector<1x256xf32>
    %373 = arith.mulf %372, %371 : vector<1x256xf32>
    %374 = arith.addf %364, %373 : vector<1x256xf32>
    %c81 = arith.constant 81 : index
    %375 = memref.load %arg2[%c81] : memref<98xf32, #tpu.memory_space<smem>>
    %376 = vector.extract_strided_slice %15 {offsets = [0, 68], sizes = [1, 256], strides = [1, 1]} : vector<1x358xf32> to vector<1x256xf32>
    %377 = vector.broadcast %375 : f32 to vector<1x256xf32>
    %378 = arith.mulf %377, %376 : vector<1x256xf32>
    %379 = arith.addf %369, %378 : vector<1x256xf32>
    %c39 = arith.constant 39 : index
    %380 = memref.load %arg2[%c39] : memref<98xf32, #tpu.memory_space<smem>>
    %381 = vector.extract_strided_slice %10 {offsets = [0, 84], sizes = [1, 256], strides = [1, 1]} : vector<1x358xf32> to vector<1x256xf32>
    %382 = vector.broadcast %380 : f32 to vector<1x256xf32>
    %383 = arith.mulf %382, %381 : vector<1x256xf32>
    %384 = arith.addf %374, %383 : vector<1x256xf32>
    %c88 = arith.constant 88 : index
    %385 = memref.load %arg2[%c88] : memref<98xf32, #tpu.memory_space<smem>>
    %386 = vector.extract_strided_slice %15 {offsets = [0, 84], sizes = [1, 256], strides = [1, 1]} : vector<1x358xf32> to vector<1x256xf32>
    %387 = vector.broadcast %385 : f32 to vector<1x256xf32>
    %388 = arith.mulf %387, %386 : vector<1x256xf32>
    %389 = arith.addf %379, %388 : vector<1x256xf32>
    %c46 = arith.constant 46 : index
    %390 = memref.load %arg2[%c46] : memref<98xf32, #tpu.memory_space<smem>>
    %391 = vector.extract_strided_slice %10 {offsets = [0, 100], sizes = [1, 256], strides = [1, 1]} : vector<1x358xf32> to vector<1x256xf32>
    %392 = vector.broadcast %390 : f32 to vector<1x256xf32>
    %393 = arith.mulf %392, %391 : vector<1x256xf32>
    %394 = arith.addf %384, %393 : vector<1x256xf32>
    %c95 = arith.constant 95 : index
    %395 = memref.load %arg2[%c95] : memref<98xf32, #tpu.memory_space<smem>>
    %396 = vector.extract_strided_slice %15 {offsets = [0, 100], sizes = [1, 256], strides = [1, 1]} : vector<1x358xf32> to vector<1x256xf32>
    %397 = vector.broadcast %395 : f32 to vector<1x256xf32>
    %398 = arith.mulf %397, %396 : vector<1x256xf32>
    %399 = arith.addf %389, %398 : vector<1x256xf32>
    %400 = arith.mulf %327, %394 : vector<1x256xf32>
    %401 = arith.addf %324, %400 : vector<1x256xf32>
    %402 = arith.mulf %327, %399 : vector<1x256xf32>
    %403 = arith.addf %326, %402 : vector<1x256xf32>
    %404 = vector.extract_strided_slice %16 {offsets = [5, 0], sizes = [1, 256], strides = [1, 1]} : vector<7x256xf32> to vector<1x256xf32>
    %cst_19 = arith.constant 0.000000e+00 : f32
    %405 = vector.broadcast %cst_19 : f32 to vector<1x256xf32>
    %cst_20 = arith.constant 0.000000e+00 : f32
    %406 = vector.broadcast %cst_20 : f32 to vector<1x256xf32>
    %c5 = arith.constant 5 : index
    %407 = memref.load %arg2[%c5] : memref<98xf32, #tpu.memory_space<smem>>
    %408 = vector.extract_strided_slice %10 {offsets = [0, 5], sizes = [1, 256], strides = [1, 1]} : vector<1x358xf32> to vector<1x256xf32>
    %409 = vector.broadcast %407 : f32 to vector<1x256xf32>
    %410 = arith.mulf %409, %408 : vector<1x256xf32>
    %411 = arith.addf %405, %410 : vector<1x256xf32>
    %c54 = arith.constant 54 : index
    %412 = memref.load %arg2[%c54] : memref<98xf32, #tpu.memory_space<smem>>
    %413 = vector.extract_strided_slice %15 {offsets = [0, 5], sizes = [1, 256], strides = [1, 1]} : vector<1x358xf32> to vector<1x256xf32>
    %414 = vector.broadcast %412 : f32 to vector<1x256xf32>
    %415 = arith.mulf %414, %413 : vector<1x256xf32>
    %416 = arith.addf %406, %415 : vector<1x256xf32>
    %c12 = arith.constant 12 : index
    %417 = memref.load %arg2[%c12] : memref<98xf32, #tpu.memory_space<smem>>
    %418 = vector.extract_strided_slice %10 {offsets = [0, 21], sizes = [1, 256], strides = [1, 1]} : vector<1x358xf32> to vector<1x256xf32>
    %419 = vector.broadcast %417 : f32 to vector<1x256xf32>
    %420 = arith.mulf %419, %418 : vector<1x256xf32>
    %421 = arith.addf %411, %420 : vector<1x256xf32>
    %c61 = arith.constant 61 : index
    %422 = memref.load %arg2[%c61] : memref<98xf32, #tpu.memory_space<smem>>
    %423 = vector.extract_strided_slice %15 {offsets = [0, 21], sizes = [1, 256], strides = [1, 1]} : vector<1x358xf32> to vector<1x256xf32>
    %424 = vector.broadcast %422 : f32 to vector<1x256xf32>
    %425 = arith.mulf %424, %423 : vector<1x256xf32>
    %426 = arith.addf %416, %425 : vector<1x256xf32>
    %c19 = arith.constant 19 : index
    %427 = memref.load %arg2[%c19] : memref<98xf32, #tpu.memory_space<smem>>
    %428 = vector.extract_strided_slice %10 {offsets = [0, 37], sizes = [1, 256], strides = [1, 1]} : vector<1x358xf32> to vector<1x256xf32>
    %429 = vector.broadcast %427 : f32 to vector<1x256xf32>
    %430 = arith.mulf %429, %428 : vector<1x256xf32>
    %431 = arith.addf %421, %430 : vector<1x256xf32>
    %c68 = arith.constant 68 : index
    %432 = memref.load %arg2[%c68] : memref<98xf32, #tpu.memory_space<smem>>
    %433 = vector.extract_strided_slice %15 {offsets = [0, 37], sizes = [1, 256], strides = [1, 1]} : vector<1x358xf32> to vector<1x256xf32>
    %434 = vector.broadcast %432 : f32 to vector<1x256xf32>
    %435 = arith.mulf %434, %433 : vector<1x256xf32>
    %436 = arith.addf %426, %435 : vector<1x256xf32>
    %c26 = arith.constant 26 : index
    %437 = memref.load %arg2[%c26] : memref<98xf32, #tpu.memory_space<smem>>
    %438 = vector.extract_strided_slice %10 {offsets = [0, 53], sizes = [1, 256], strides = [1, 1]} : vector<1x358xf32> to vector<1x256xf32>
    %439 = vector.broadcast %437 : f32 to vector<1x256xf32>
    %440 = arith.mulf %439, %438 : vector<1x256xf32>
    %441 = arith.addf %431, %440 : vector<1x256xf32>
    %c75 = arith.constant 75 : index
    %442 = memref.load %arg2[%c75] : memref<98xf32, #tpu.memory_space<smem>>
    %443 = vector.extract_strided_slice %15 {offsets = [0, 53], sizes = [1, 256], strides = [1, 1]} : vector<1x358xf32> to vector<1x256xf32>
    %444 = vector.broadcast %442 : f32 to vector<1x256xf32>
    %445 = arith.mulf %444, %443 : vector<1x256xf32>
    %446 = arith.addf %436, %445 : vector<1x256xf32>
    %c33 = arith.constant 33 : index
    %447 = memref.load %arg2[%c33] : memref<98xf32, #tpu.memory_space<smem>>
    %448 = vector.extract_strided_slice %10 {offsets = [0, 69], sizes = [1, 256], strides = [1, 1]} : vector<1x358xf32> to vector<1x256xf32>
    %449 = vector.broadcast %447 : f32 to vector<1x256xf32>
    %450 = arith.mulf %449, %448 : vector<1x256xf32>
    %451 = arith.addf %441, %450 : vector<1x256xf32>
    %c82 = arith.constant 82 : index
    %452 = memref.load %arg2[%c82] : memref<98xf32, #tpu.memory_space<smem>>
    %453 = vector.extract_strided_slice %15 {offsets = [0, 69], sizes = [1, 256], strides = [1, 1]} : vector<1x358xf32> to vector<1x256xf32>
    %454 = vector.broadcast %452 : f32 to vector<1x256xf32>
    %455 = arith.mulf %454, %453 : vector<1x256xf32>
    %456 = arith.addf %446, %455 : vector<1x256xf32>
    %c40 = arith.constant 40 : index
    %457 = memref.load %arg2[%c40] : memref<98xf32, #tpu.memory_space<smem>>
    %458 = vector.extract_strided_slice %10 {offsets = [0, 85], sizes = [1, 256], strides = [1, 1]} : vector<1x358xf32> to vector<1x256xf32>
    %459 = vector.broadcast %457 : f32 to vector<1x256xf32>
    %460 = arith.mulf %459, %458 : vector<1x256xf32>
    %461 = arith.addf %451, %460 : vector<1x256xf32>
    %c89 = arith.constant 89 : index
    %462 = memref.load %arg2[%c89] : memref<98xf32, #tpu.memory_space<smem>>
    %463 = vector.extract_strided_slice %15 {offsets = [0, 85], sizes = [1, 256], strides = [1, 1]} : vector<1x358xf32> to vector<1x256xf32>
    %464 = vector.broadcast %462 : f32 to vector<1x256xf32>
    %465 = arith.mulf %464, %463 : vector<1x256xf32>
    %466 = arith.addf %456, %465 : vector<1x256xf32>
    %c47 = arith.constant 47 : index
    %467 = memref.load %arg2[%c47] : memref<98xf32, #tpu.memory_space<smem>>
    %468 = vector.extract_strided_slice %10 {offsets = [0, 101], sizes = [1, 256], strides = [1, 1]} : vector<1x358xf32> to vector<1x256xf32>
    %469 = vector.broadcast %467 : f32 to vector<1x256xf32>
    %470 = arith.mulf %469, %468 : vector<1x256xf32>
    %471 = arith.addf %461, %470 : vector<1x256xf32>
    %c96 = arith.constant 96 : index
    %472 = memref.load %arg2[%c96] : memref<98xf32, #tpu.memory_space<smem>>
    %473 = vector.extract_strided_slice %15 {offsets = [0, 101], sizes = [1, 256], strides = [1, 1]} : vector<1x358xf32> to vector<1x256xf32>
    %474 = vector.broadcast %472 : f32 to vector<1x256xf32>
    %475 = arith.mulf %474, %473 : vector<1x256xf32>
    %476 = arith.addf %466, %475 : vector<1x256xf32>
    %477 = arith.mulf %404, %471 : vector<1x256xf32>
    %478 = arith.addf %401, %477 : vector<1x256xf32>
    %479 = arith.mulf %404, %476 : vector<1x256xf32>
    %480 = arith.addf %403, %479 : vector<1x256xf32>
    %481 = vector.extract_strided_slice %16 {offsets = [6, 0], sizes = [1, 256], strides = [1, 1]} : vector<7x256xf32> to vector<1x256xf32>
    %cst_21 = arith.constant 0.000000e+00 : f32
    %482 = vector.broadcast %cst_21 : f32 to vector<1x256xf32>
    %cst_22 = arith.constant 0.000000e+00 : f32
    %483 = vector.broadcast %cst_22 : f32 to vector<1x256xf32>
    %c6 = arith.constant 6 : index
    %484 = memref.load %arg2[%c6] : memref<98xf32, #tpu.memory_space<smem>>
    %485 = vector.extract_strided_slice %10 {offsets = [0, 6], sizes = [1, 256], strides = [1, 1]} : vector<1x358xf32> to vector<1x256xf32>
    %486 = vector.broadcast %484 : f32 to vector<1x256xf32>
    %487 = arith.mulf %486, %485 : vector<1x256xf32>
    %488 = arith.addf %482, %487 : vector<1x256xf32>
    %c55 = arith.constant 55 : index
    %489 = memref.load %arg2[%c55] : memref<98xf32, #tpu.memory_space<smem>>
    %490 = vector.extract_strided_slice %15 {offsets = [0, 6], sizes = [1, 256], strides = [1, 1]} : vector<1x358xf32> to vector<1x256xf32>
    %491 = vector.broadcast %489 : f32 to vector<1x256xf32>
    %492 = arith.mulf %491, %490 : vector<1x256xf32>
    %493 = arith.addf %483, %492 : vector<1x256xf32>
    %c13 = arith.constant 13 : index
    %494 = memref.load %arg2[%c13] : memref<98xf32, #tpu.memory_space<smem>>
    %495 = vector.extract_strided_slice %10 {offsets = [0, 22], sizes = [1, 256], strides = [1, 1]} : vector<1x358xf32> to vector<1x256xf32>
    %496 = vector.broadcast %494 : f32 to vector<1x256xf32>
    %497 = arith.mulf %496, %495 : vector<1x256xf32>
    %498 = arith.addf %488, %497 : vector<1x256xf32>
    %c62 = arith.constant 62 : index
    %499 = memref.load %arg2[%c62] : memref<98xf32, #tpu.memory_space<smem>>
    %500 = vector.extract_strided_slice %15 {offsets = [0, 22], sizes = [1, 256], strides = [1, 1]} : vector<1x358xf32> to vector<1x256xf32>
    %501 = vector.broadcast %499 : f32 to vector<1x256xf32>
    %502 = arith.mulf %501, %500 : vector<1x256xf32>
    %503 = arith.addf %493, %502 : vector<1x256xf32>
    %c20 = arith.constant 20 : index
    %504 = memref.load %arg2[%c20] : memref<98xf32, #tpu.memory_space<smem>>
    %505 = vector.extract_strided_slice %10 {offsets = [0, 38], sizes = [1, 256], strides = [1, 1]} : vector<1x358xf32> to vector<1x256xf32>
    %506 = vector.broadcast %504 : f32 to vector<1x256xf32>
    %507 = arith.mulf %506, %505 : vector<1x256xf32>
    %508 = arith.addf %498, %507 : vector<1x256xf32>
    %c69 = arith.constant 69 : index
    %509 = memref.load %arg2[%c69] : memref<98xf32, #tpu.memory_space<smem>>
    %510 = vector.extract_strided_slice %15 {offsets = [0, 38], sizes = [1, 256], strides = [1, 1]} : vector<1x358xf32> to vector<1x256xf32>
    %511 = vector.broadcast %509 : f32 to vector<1x256xf32>
    %512 = arith.mulf %511, %510 : vector<1x256xf32>
    %513 = arith.addf %503, %512 : vector<1x256xf32>
    %c27 = arith.constant 27 : index
    %514 = memref.load %arg2[%c27] : memref<98xf32, #tpu.memory_space<smem>>
    %515 = vector.extract_strided_slice %10 {offsets = [0, 54], sizes = [1, 256], strides = [1, 1]} : vector<1x358xf32> to vector<1x256xf32>
    %516 = vector.broadcast %514 : f32 to vector<1x256xf32>
    %517 = arith.mulf %516, %515 : vector<1x256xf32>
    %518 = arith.addf %508, %517 : vector<1x256xf32>
    %c76 = arith.constant 76 : index
    %519 = memref.load %arg2[%c76] : memref<98xf32, #tpu.memory_space<smem>>
    %520 = vector.extract_strided_slice %15 {offsets = [0, 54], sizes = [1, 256], strides = [1, 1]} : vector<1x358xf32> to vector<1x256xf32>
    %521 = vector.broadcast %519 : f32 to vector<1x256xf32>
    %522 = arith.mulf %521, %520 : vector<1x256xf32>
    %523 = arith.addf %513, %522 : vector<1x256xf32>
    %c34 = arith.constant 34 : index
    %524 = memref.load %arg2[%c34] : memref<98xf32, #tpu.memory_space<smem>>
    %525 = vector.extract_strided_slice %10 {offsets = [0, 70], sizes = [1, 256], strides = [1, 1]} : vector<1x358xf32> to vector<1x256xf32>
    %526 = vector.broadcast %524 : f32 to vector<1x256xf32>
    %527 = arith.mulf %526, %525 : vector<1x256xf32>
    %528 = arith.addf %518, %527 : vector<1x256xf32>
    %c83 = arith.constant 83 : index
    %529 = memref.load %arg2[%c83] : memref<98xf32, #tpu.memory_space<smem>>
    %530 = vector.extract_strided_slice %15 {offsets = [0, 70], sizes = [1, 256], strides = [1, 1]} : vector<1x358xf32> to vector<1x256xf32>
    %531 = vector.broadcast %529 : f32 to vector<1x256xf32>
    %532 = arith.mulf %531, %530 : vector<1x256xf32>
    %533 = arith.addf %523, %532 : vector<1x256xf32>
    %c41 = arith.constant 41 : index
    %534 = memref.load %arg2[%c41] : memref<98xf32, #tpu.memory_space<smem>>
    %535 = vector.extract_strided_slice %10 {offsets = [0, 86], sizes = [1, 256], strides = [1, 1]} : vector<1x358xf32> to vector<1x256xf32>
    %536 = vector.broadcast %534 : f32 to vector<1x256xf32>
    %537 = arith.mulf %536, %535 : vector<1x256xf32>
    %538 = arith.addf %528, %537 : vector<1x256xf32>
    %c90 = arith.constant 90 : index
    %539 = memref.load %arg2[%c90] : memref<98xf32, #tpu.memory_space<smem>>
    %540 = vector.extract_strided_slice %15 {offsets = [0, 86], sizes = [1, 256], strides = [1, 1]} : vector<1x358xf32> to vector<1x256xf32>
    %541 = vector.broadcast %539 : f32 to vector<1x256xf32>
    %542 = arith.mulf %541, %540 : vector<1x256xf32>
    %543 = arith.addf %533, %542 : vector<1x256xf32>
    %c48 = arith.constant 48 : index
    %544 = memref.load %arg2[%c48] : memref<98xf32, #tpu.memory_space<smem>>
    %545 = vector.extract_strided_slice %10 {offsets = [0, 102], sizes = [1, 256], strides = [1, 1]} : vector<1x358xf32> to vector<1x256xf32>
    %546 = vector.broadcast %544 : f32 to vector<1x256xf32>
    %547 = arith.mulf %546, %545 : vector<1x256xf32>
    %548 = arith.addf %538, %547 : vector<1x256xf32>
    %c97 = arith.constant 97 : index
    %549 = memref.load %arg2[%c97] : memref<98xf32, #tpu.memory_space<smem>>
    %550 = vector.extract_strided_slice %15 {offsets = [0, 102], sizes = [1, 256], strides = [1, 1]} : vector<1x358xf32> to vector<1x256xf32>
    %551 = vector.broadcast %549 : f32 to vector<1x256xf32>
    %552 = arith.mulf %551, %550 : vector<1x256xf32>
    %553 = arith.addf %543, %552 : vector<1x256xf32>
    %554 = arith.mulf %481, %548 : vector<1x256xf32>
    %555 = arith.addf %478, %554 : vector<1x256xf32>
    %556 = arith.mulf %481, %553 : vector<1x256xf32>
    %557 = arith.addf %480, %556 : vector<1x256xf32>
    %558 = arith.addf %555, %557 : vector<1x256xf32>
    %559 = arith.negf %558 : vector<1x256xf32>
    %560 = math.exp %559 : vector<1x256xf32>
    %cst_23 = arith.constant 1.000000e+00 : f32
    %561 = vector.broadcast %cst_23 : f32 to vector<1x256xf32>
    %562 = arith.addf %561, %560 : vector<1x256xf32>
    %563 = arith.divf %561, %562 : vector<1x256xf32>
    %c0_24 = arith.constant 0 : index
    %c0_25 = arith.constant 0 : index
    %c0_26 = arith.constant 0 : index
    %564 = vector.load %arg4[%c0_24, %c0_25, %c0_26] : memref<1x1x256xf32, #tpu.memory_space<vmem>>, vector<1x1x256xf32>
    %565 = vector.shape_cast %564 : vector<1x1x256xf32> to vector<1x256xf32>
    %566 = vector.shape_cast %563 : vector<1x256xf32> to vector<1x1x256xf32>
    tpu.vector_store %arg4[%c0_24, %c0_25, %c0_26], %566 {strides = array<i32>} : memref<1x1x256xf32, #tpu.memory_space<vmem>>, vector<1x1x256xf32>,
    return
  }
  func.func @transform_0(%arg0: i32) -> (i32, i32, i32) {
    %c0_i32 = arith.constant 0 : i32
    %c0_i32_0 = arith.constant 0 : i32
    %c0_i32_1 = arith.constant 0 : i32
    return %arg0, %c0_i32, %c0_i32_0 : i32, i32, i32
  }
  func.func @transform_1(%arg0: i32) -> i32 {
    %c0_i32 = arith.constant 0 : i32
    %c0_i32_0 = arith.constant 0 : i32
    return %c0_i32 : i32
  }
  func.func @transform_2(%arg0: i32) -> (i32, i32) {
    %c0_i32 = arith.constant 0 : i32
    %c0_i32_0 = arith.constant 0 : i32
    %c0_i32_1 = arith.constant 0 : i32
    return %c0_i32, %c0_i32_0 : i32, i32
  }
  func.func @transform_3(%arg0: i32) -> (i32, i32, i32) {
    %c0_i32 = arith.constant 0 : i32
    %c0_i32_0 = arith.constant 0 : i32
    %c0_i32_1 = arith.constant 0 : i32
    return %arg0, %c0_i32, %c0_i32_0 : i32, i32, i32
  }
}

</mosaic_0001>

<llo_original>
// kernel: tpu_custom_call.1
$region0: #{tpu_custom_call.1}
  #allocation0 [shape = 'u32[]', space=smem, size = 0x4, offset = 0x4, fixed_abs, tag = 'smem constant byte address 0x4 - core index']
  #allocation1 [shape = 'u32[72,128]{1,0:T(1,128)}', space=vmem, size = 0x9000, scoped, tag = 'internal scratch']
  %s0 = inlined_call_operand.hbm [shape: f32[2,4,256], index: 0, kind: input, shape index: {}]
  %s1 = inlined_call_operand.hbm [shape: f32[98], index: 1, kind: input, shape index: {}]
  %s2 = inlined_call_operand.hbm [shape: f32[7,256], index: 2, kind: input, shape index: {}]
  %s3 = inlined_call_operand.hbm [shape: f32[2,1,256], index: 3, kind: output, shape index: {}]
  %s4 = sld [smem:[#allocation0]]
  $region57: #{tpu_custom_call.1} parent=0
    _
  %s6 = ssub.s32 1, %s4
  %s7 = scalar_select 0, %s6, %s4
  $region1: #{tpu_custom_call.1} parent=0
    #allocation2 [shape = 'u8[8192]{0}', space=vmem, size = 0x2000, scoped, tag = 'input window, operand 0']
    #allocation3 [shape = 's32[2]{0}', space=sflag, size = 0x8, scoped, tag = 'scoped memory for tpu_custom_call.1']
    #allocation4 [shape = 's32[2]{0}', space=sflag, size = 0x8, scoped, tag = 'scoped memory for tpu_custom_call.1']
    #allocation5 [shape = 's32[2]{0}', space=sflag, size = 0x8, scoped, tag = 'scoped memory for tpu_custom_call.1']
    #allocation6 [shape = 'u8[512]{0}', space=smem, size = 0x200, scoped, tag = 'input window, operand 1, single buffered']
    #allocation7 [shape = 'u8[8192]{0}', space=vmem, size = 0x2000, scoped, tag = 'input window, operand 2, single buffered']
    #allocation8 [shape = 's32[1]{0}', space=sflag, size = 0x4, scoped, tag = 'scoped memory for tpu_custom_call.1']
    #allocation9 [shape = 'u8[2048]{0}', space=vmem, size = 0x800, scoped, tag = 'output window, operand 0']
    %8 = vsyncpa [#allocation3], 0
    %s9 = scalar_lea.sflag [#allocation3], 1
    %10 = vsyncpa %s9, 0
    %11 = vsyncpa [#allocation5], 0
    %12 = vsyncpa [#allocation8], 0
    %13 = vsyncpa [#allocation4], 0
    %s14 = scalar_lea.sflag [#allocation4], 1
    %15 = vsyncpa %s14, 0
    loop: start=0, step=1, limit=4
    $region2: #{tpu_custom_call.1} parent=1 // loop_pre_header
      _
    $region3: #{tpu_custom_call.1} parent=1 // loop_header
      %s17 = sphi 0, %s21
      %p18 = scmp.ge.s32.totalorder %s17, 4
      %s27 = sphi 0, %s29
      %s30 = sphi 0, %s27
      %s31 = sphi 0, %s30
      %s47 = sphi 0, %s31
      %s51 = sphi 0, %s51
      %s53 = sphi 0, %s51
      %s54 = sphi 0, %s53
      %s68 = sphi 0, %s54
      %s72 = sphi 0, %s72
      %s74 = sphi 0, %s72
      %s75 = sphi 0, %s74
      %s89 = sphi 0, %s75
      %s95 = sphi 0, %s97
      %s98 = sphi 0, %s95
      %s99 = sphi 0, %s98
      %s115 = sphi 0, %s99
    $region4: #{tpu_custom_call.1} parent=1 // loop_header_branch
      %20 = sbr.rel (%p18) target = $region8
    $region5: #{tpu_custom_call.1} parent=1 // loop_body
      %s22 = ssub.s32 %s17, 1
      %s23 = ssub.s32 %s17, 2
      %s24 = sadd.s32 %s17, 1
      %s25 = ssub.s32 %s17, %s24
      %p26 = scmp.eq.s32.totalorder %s25, 0
      %s28 = sadd.s32 %s27, 1
      %s29 = scalar_select %p26, %s27, %s28
      %p32 = pneg %p26
      %p33 = scmp.eq.s32.totalorder %s17, 1
      %p34 = por %p32, %p33
      %p35 = scmp.ne.s32.totalorder %s27, %s30
      %p36 = scmp.eq.s32.totalorder %s17, 0
      %p37 = por %p35, %p36
      %p38 = scmp.ne.s32.totalorder %s27, %s30
      %p39 = scmp.eq.s32.totalorder %s22, 1
      %p40 = por %p38, %p39
      %p41 = scmp.ne.s32.totalorder %s30, %s31
      %p42 = scmp.eq.s32.totalorder %s22, 0
      %p43 = por %p41, %p42
      %p44 = scmp.ne.s32.totalorder %s30, %s31
      %p45 = scmp.eq.s32.totalorder %s23, 1
      %p46 = por %p44, %p45
      %p48 = scmp.ne.s32.totalorder %s31, %s47
      %p49 = scmp.eq.s32.totalorder %s23, 0
      %p50 = por %p48, %p49
      %s52 = sadd.s32 %s51, 1
      %p55 = scmp.eq.s32.totalorder %s17, 1
      %p56 = scmp.ne.s32.totalorder %s51, %s53
      %p57 = scmp.eq.s32.totalorder %s17, 0
      %p58 = por %p56, %p57
      %p59 = scmp.ne.s32.totalorder %s51, %s53
      %p60 = scmp.eq.s32.totalorder %s22, 1
      %p61 = por %p59, %p60
      %p62 = scmp.ne.s32.totalorder %s53, %s54
      %p63 = scmp.eq.s32.totalorder %s22, 0
      %p64 = por %p62, %p63
      %p65 = scmp.ne.s32.totalorder %s53, %s54
      %p66 = scmp.eq.s32.totalorder %s23, 1
      %p67 = por %p65, %p66
      %p69 = scmp.ne.s32.totalorder %s54, %s68
      %p70 = scmp.eq.s32.totalorder %s23, 0
      %p71 = por %p69, %p70
      %s73 = sadd.s32 %s72, 1
      %p76 = scmp.eq.s32.totalorder %s17, 1
      %p77 = scmp.ne.s32.totalorder %s72, %s74
      %p78 = scmp.eq.s32.totalorder %s17, 0
      %p79 = por %p77, %p78
      %p80 = scmp.ne.s32.totalorder %s72, %s74
      %p81 = scmp.eq.s32.totalorder %s22, 1
      %p82 = por %p80, %p81
      %p83 = scmp.ne.s32.totalorder %s74, %s75
      %p84 = scmp.eq.s32.totalorder %s22, 0
      %p85 = por %p83, %p84
      %p86 = scmp.ne.s32.totalorder %s74, %s75
      %p87 = scmp.eq.s32.totalorder %s23, 1
      %p88 = por %p86, %p87
      %p90 = scmp.ne.s32.totalorder %s75, %s89
      %p91 = scmp.eq.s32.totalorder %s23, 0
      %p92 = por %p90, %p91
      %s93 = ssub.s32 %s17, %s24
      %p94 = scmp.eq.s32.totalorder %s93, 0
      %s96 = sadd.s32 %s95, 1
      %s97 = scalar_select %p94, %s95, %s96
      %p100 = pneg %p94
      %p101 = scmp.eq.s32.totalorder %s17, 1
      %p102 = por %p100, %p101
      %p103 = scmp.ne.s32.totalorder %s95, %s98
      %p104 = scmp.eq.s32.totalorder %s17, 0
      %p105 = por %p103, %p104
      %p106 = scmp.ne.s32.totalorder %s95, %s98
      %p107 = scmp.eq.s32.totalorder %s22, 1
      %p108 = por %p106, %p107
      %p109 = scmp.ne.s32.totalorder %s98, %s99
      %p110 = scmp.eq.s32.totalorder %s22, 0
      %p111 = por %p109, %p110
      %p112 = scmp.ne.s32.totalorder %s98, %s99
      %p113 = scmp.eq.s32.totalorder %s23, 1
      %p114 = por %p112, %p113
      %p116 = scmp.ne.s32.totalorder %s99, %s115
      %p117 = scmp.eq.s32.totalorder %s23, 0
      %p118 = por %p116, %p117
      %p119 = scmp.le.s32.totalorder 1, %s17
      %p120 = scmp.lt.s32.totalorder %s17, 3
      %p121 = pnand %p119, %p120
      %p122 = pneg %p121
      // Predicated region
      $region9: #{tpu_custom_call.1} parent=5 // pred_check
        _
      $region10: #{tpu_custom_call.1} parent=5 // pred_check_branch
        %124 = sbr.rel (%p121) target = $region12
      $region11: #{tpu_custom_call.1} parent=5 // pred_region
        %s125 = ssub.s32 %s17, 1
        // Predicated region
        $region13: #{tpu_custom_call.1} parent=11 // pred_check
          %p126 = pneg %p64
        $region14: #{tpu_custom_call.1} parent=11 // pred_check_branch
          %128 = sbr.rel (%p126) target = $region16
        $region15: #{tpu_custom_call.1} parent=11 // pred_region
          %130 = vsyncadd [#allocation5], 0
          %s132 = sshll.u32 %s1, 4
          %s133 = int_to_ptr.hbm [resolvable:$true] %s132
          %135 = dma.hbm_to_smem %s133, 16, [#allocation6], [#allocation5]
        $region16: #{tpu_custom_call.1} parent=11 // pred_fallthru
          _
        // Predicated region
        $region17: #{tpu_custom_call.1} parent=11 // pred_check
          %p136 = pneg %p85
        $region18: #{tpu_custom_call.1} parent=11 // pred_check_branch
          %138 = sbr.rel (%p136) target = $region20
        $region19: #{tpu_custom_call.1} parent=11 // pred_region
          %140 = vsyncadd [#allocation8], 0
          %s142 = sshll.u32 %s2, 4
          %s143 = int_to_ptr.hbm [resolvable:$true] %s142
          %s144 = sshll.u32 [#allocation7], 4
          %s145 = int_to_ptr.vmem [resolvable:$true] %s144
          %147 = dma.hbm_to_vmem [thread:$0]  %s143, 256, %s145, [#allocation8]
        $region20: #{tpu_custom_call.1} parent=11 // pred_fallthru
          _
      $region12: #{tpu_custom_call.1} parent=5 // pred_fallthru
        _
      %p148 = scmp.lt.s32.totalorder %s17, 2
      // Predicated region
      $region21: #{tpu_custom_call.1} parent=5 // pred_check
        %p149 = pneg %p148
      $region22: #{tpu_custom_call.1} parent=5 // pred_check_branch
        %151 = sbr.rel (%p149) target = $region24
      $region23: #{tpu_custom_call.1} parent=5 // pred_region
        // Predicated region
        $region25: #{tpu_custom_call.1} parent=23 // pred_check
          %p152 = pneg %p37
        $region26: #{tpu_custom_call.1} parent=23 // pred_check_branch
          %154 = sbr.rel (%p152) target = $region28
        $region27: #{tpu_custom_call.1} parent=23 // pred_region
          %s155 = sand.u32 %s27, 1
          %s156 = scalar_lea.sflag [#allocation3], %s155
          %s157 = sand.u32 %s27, 1
          %s158 = smul.addr %s157, 8
          %s159 = scalar_lea.vmem [#allocation2], %s158
          %161 = vsyncadd %s156, 0
          %s162 = smul.addr %s17, 2
          %s163 = smul.addr %s162, 4
          %s164 = scalar_lea.hbm %s0, %s163
          %s166 = sshll.u32 %s164, 4
          %s167 = int_to_ptr.hbm [resolvable:$true] %s166
          %s168 = sshll.u32 %s159, 4
          %s169 = int_to_ptr.vmem [resolvable:$true] %s168
          %171 = dma.hbm_to_vmem [thread:$0]  %s167, 128, %s169, %s156
        $region28: #{tpu_custom_call.1} parent=23 // pred_fallthru
          _
      $region24: #{tpu_custom_call.1} parent=5 // pred_fallthru
        _
      %p172 = scmp.le.s32.totalorder 1, %s17
      %p173 = scmp.lt.s32.totalorder %s17, 3
      %p174 = pnand %p172, %p173
      %p175 = pneg %p174
      // Predicated region
      $region29: #{tpu_custom_call.1} parent=5 // pred_check
        _
      $region30: #{tpu_custom_call.1} parent=5 // pred_check_branch
        %177 = sbr.rel (%p174) target = $region32
      $region31: #{tpu_custom_call.1} parent=5 // pred_region
        %s178 = ssub.s32 %s17, 1
        %s179 = sand.u32 %s30, 1
        %s180 = scalar_lea.sflag [#allocation3], %s179
        %s181 = sand.u32 %s30, 1
        %s182 = smul.addr %s181, 8
        %s183 = scalar_lea.vmem [#allocation2], %s182
        // Predicated region
        $region33: #{tpu_custom_call.1} parent=31 // pred_check
          %p184 = pneg %p43
        $region34: #{tpu_custom_call.1} parent=31 // pred_check_branch
          %186 = sbr.rel (%p184) target = $region36
        $region35: #{tpu_custom_call.1} parent=31 // pred_region
          %188 = dma.done %s180, 128
        $region36: #{tpu_custom_call.1} parent=31 // pred_fallthru
          _
        // Predicated region
        $region37: #{tpu_custom_call.1} parent=31 // pred_check
          %p189 = pneg %p64
        $region38: #{tpu_custom_call.1} parent=31 // pred_check_branch
          %191 = sbr.rel (%p189) target = $region40
        $region39: #{tpu_custom_call.1} parent=31 // pred_region
          %193 = dma.done [#allocation5], 16
        $region40: #{tpu_custom_call.1} parent=31 // pred_fallthru
          _
        // Predicated region
        $region41: #{tpu_custom_call.1} parent=31 // pred_check
          %p194 = pneg %p85
        $region42: #{tpu_custom_call.1} parent=31 // pred_check_branch
          %196 = sbr.rel (%p194) target = $region44
        $region43: #{tpu_custom_call.1} parent=31 // pred_region
          %198 = dma.done [#allocation8], 256
        $region44: #{tpu_custom_call.1} parent=31 // pred_fallthru
          _
        %199 = sfence
        %s200 = sand.u32 %s30, 1
        %s201 = scalar_lea.sflag [#allocation3], %s200
        %s202 = sand.u32 %s30, 1
        %s203 = smul.addr %s202, 8
        %s204 = scalar_lea.vmem [#allocation2], %s203
        %p205 = pneg %p43
        %p206 = pneg %p40
        %p207 = pneg %p64
        %p208 = pneg %p61
        %p209 = pneg %p85
        %p210 = pneg %p82
        %p211 = pneg %p111
        %p212 = pneg %p108
        %s213 = sand.u32 %s98, 1
        %s214 = scalar_lea.sflag [#allocation4], %s213
        %s215 = sand.u32 %s98, 1
        %s216 = smul.addr %s215, 2
        %s217 = scalar_lea.vmem [#allocation9], %s216
        %v218 = vld [vmem:[%s183] sm:$0xff]
        %220 = vst [vmem:[#allocation1] ss:$2 sm:$0xff] %v218
        %v221 = vld.sshfl [vmem:[#allocation1] sm:$0xff pattern:$0x75316420]
        %v222 = vld.sshfl [vmem:[#allocation1 + $0x8] sm:$0xff pattern:$0x75316420]
        %vm225 = vcmask 1043456
        %v226 = vsel %vm225, %v221, -inf
        %v227 = vrot.slane %v226, 4
        %v228 = vmax.f32 %v226, %v227
        %v229 = vrot.slane %v228, 2
        %v230 = vmax.f32 %v228, %v229
        %v231 = vrot.slane %v230, 1
        %v232 = vmax.f32 %v230, %v231
        %v233 = vsel %vm225, %v222, -inf
        %v234 = vrot.slane %v233, 4
        %v235 = vmax.f32 %v233, %v234
        %v236 = vrot.slane %v235, 2
        %v237 = vmax.f32 %v235, %v236
        %v238 = vrot.slane %v237, 1
        %v239 = vmax.f32 %v237, %v238
        %240 = vst [vmem:[#allocation1] ss:$2 sm:$0xff] %v218
        %v241 = vld.sshfl [vmem:[#allocation1] sm:$0xff pattern:$0x75316420]
        %v242 = vld.sshfl [vmem:[#allocation1 + $0x8] sm:$0xff pattern:$0x75316420]
        %v245 = vsel %vm225, %v241, 0.0
        %v246 = vrot.slane %v245, 4
        %v247 = vadd.f32 %v245, %v246
        %v248 = vrot.slane %v247, 2
        %v249 = vadd.f32 %v247, %v248
        %v250 = vrot.slane %v249, 1
        %v251 = vadd.f32 %v249, %v250
        %v252 = vsel %vm225, %v242, 0.0
        %v253 = vrot.slane %v252, 4
        %v254 = vadd.f32 %v252, %v253
        %v255 = vrot.slane %v254, 2
        %v256 = vadd.f32 %v254, %v255
        %v257 = vrot.slane %v256, 1
        %v258 = vadd.f32 %v256, %v257
        %261 = vrot.lane.b32.xlu0 %v232, 51
        %v262 = vpop.permute.xlu0 %261
        %263 = vrot.lane.b32.xlu0 %v239, 51
        %v264 = vpop.permute.xlu0 %263
        %vm265 = vcmask 416768
        %v266 = vsel %vm265, %v262, %v264
        %v270 = vsel %vm265, 0.0, %v262
        %v271 = vsel %vm265, %v264, 0.0
        %274 = vrot.lane.b32.xlu0 %v251, 51
        %v275 = vpop.permute.xlu0 %274
        %276 = vrot.lane.b32.xlu0 %v258, 51
        %v277 = vpop.permute.xlu0 %276
        %v278 = vsel %vm265, %v275, %v277
        %v282 = vsel %vm265, 0.0, %v275
        %v283 = vsel %vm265, %v277, 0.0
        %v284 = vld [vmem:[#allocation7] sm:$0x7f]
        %v285 = vld [vmem:[#allocation7 + $0x8] sm:$0x7f]
        %s286 = sld [smem:[#allocation6]]
        %v287 = vstv %s286
        %v288 = vmul.f32 %v287, %v270
        %v289 = vmul.f32 %v287, %v266
        %v290 = vadd.f32 %v288, 0.0
        %v291 = vadd.f32 %v289, 0.0
        %s292 = sld [smem:[#allocation6 + $0x31]]
        %v293 = vstv %s292
        %v294 = vmul.f32 %v293, %v282
        %v295 = vmul.f32 %v293, %v278
        %v296 = vadd.f32 %v294, 0.0
        %v297 = vadd.f32 %v295, 0.0
        %s298 = sld [smem:[#allocation6 + $0x7]]
        %v299 = vstv %s298
        %v300 = vmul.f32 %v299, %v270
        %v301 = vmul.f32 %v299, %v266
        %v302 = vmul.f32 %v299, %v271
        %306 = vrot.lane.b32.xlu0 %v300, 112
        %v307 = vpop.permute.xlu0 %306
        %308 = vrot.lane.b32.xlu0 %v301, 112
        %v309 = vpop.permute.xlu0 %308
        %310 = vrot.lane.b32.xlu0 %v302, 112
        %v311 = vpop.permute.xlu0 %310
        %vm312 = vcmask 916480
        %v313 = vsel %vm312, %v307, %v309
        %v314 = vsel %vm312, %v309, %v311
        %v317 = vadd.f32 %v290, %v313
        %v318 = vadd.f32 %v291, %v314
        %s319 = sld [smem:[#allocation6 + $0x38]]
        %v320 = vstv %s319
        %v321 = vmul.f32 %v320, %v282
        %v322 = vmul.f32 %v320, %v278
        %v323 = vmul.f32 %v320, %v283
        %327 = vrot.lane.b32.xlu0 %v321, 112
        %v328 = vpop.permute.xlu0 %327
        %329 = vrot.lane.b32.xlu0 %v322, 112
        %v330 = vpop.permute.xlu0 %329
        %331 = vrot.lane.b32.xlu0 %v323, 112
        %v332 = vpop.permute.xlu0 %331
        %v333 = vsel %vm312, %v328, %v330
        %v334 = vsel %vm312, %v330, %v332
        %v337 = vadd.f32 %v296, %v333
        %v338 = vadd.f32 %v297, %v334
        %s339 = sld [smem:[#allocation6 + $0xe]]
        %v340 = vstv %s339
        %v341 = vmul.f32 %v340, %v270
        %v342 = vmul.f32 %v340, %v266
        %v343 = vmul.f32 %v340, %v271
        %347 = vrot.lane.b32.xlu0 %v341, 96
        %v348 = vpop.permute.xlu0 %347
        %349 = vrot.lane.b32.xlu0 %v342, 96
        %v350 = vpop.permute.xlu0 %349
        %351 = vrot.lane.b32.xlu0 %v343, 96
        %v352 = vpop.permute.xlu0 %351
        %vm353 = vcmask 785408
        %v354 = vsel %vm353, %v348, %v350
        %v355 = vsel %vm353, %v350, %v352
        %v358 = vadd.f32 %v317, %v354
        %v359 = vadd.f32 %v318, %v355
        %s360 = sld [smem:[#allocation6 + $0x3f]]
        %v361 = vstv %s360
        %v362 = vmul.f32 %v361, %v282
        %v363 = vmul.f32 %v361, %v278
        %v364 = vmul.f32 %v361, %v283
        %368 = vrot.lane.b32.xlu0 %v362, 96
        %v369 = vpop.permute.xlu0 %368
        %370 = vrot.lane.b32.xlu0 %v363, 96
        %v371 = vpop.permute.xlu0 %370
        %372 = vrot.lane.b32.xlu0 %v364, 96
        %v373 = vpop.permute.xlu0 %372
        %v374 = vsel %vm353, %v369, %v371
        %v375 = vsel %vm353, %v371, %v373
        %v378 = vadd.f32 %v337, %v374
        %v379 = vadd.f32 %v338, %v375
        %s380 = sld [smem:[#allocation6 + $0x15]]
        %v381 = vstv %s380
        %v382 = vmul.f32 %v381, %v270
        %v383 = vmul.f32 %v381, %v266
        %v384 = vmul.f32 %v381, %v271
        %388 = vrot.lane.b32.xlu0 %v382, 80
        %v389 = vpop.permute.xlu0 %388
        %390 = vrot.lane.b32.xlu0 %v383, 80
        %v391 = vpop.permute.xlu0 %390
        %392 = vrot.lane.b32.xlu0 %v384, 80
        %v393 = vpop.permute.xlu0 %392
        %vm394 = vcmask 654336
        %v395 = vsel %vm394, %v389, %v391
        %v396 = vsel %vm394, %v391, %v393
        %v399 = vadd.f32 %v358, %v395
        %v400 = vadd.f32 %v359, %v396
        %s401 = sld [smem:[#allocation6 + $0x46]]
        %v402 = vstv %s401
        %v403 = vmul.f32 %v402, %v282
        %v404 = vmul.f32 %v402, %v278
        %v405 = vmul.f32 %v402, %v283
        %409 = vrot.lane.b32.xlu0 %v403, 80
        %v410 = vpop.permute.xlu0 %409
        %411 = vrot.lane.b32.xlu0 %v404, 80
        %v412 = vpop.permute.xlu0 %411
        %413 = vrot.lane.b32.xlu0 %v405, 80
        %v414 = vpop.permute.xlu0 %413
        %v415 = vsel %vm394, %v410, %v412
        %v416 = vsel %vm394, %v412, %v414
        %v419 = vadd.f32 %v378, %v415
        %v420 = vadd.f32 %v379, %v416
        %s421 = sld [smem:[#allocation6 + $0x1c]]
        %v422 = vstv %s421
        %v423 = vmul.f32 %v422, %v270
        %v424 = vmul.f32 %v422, %v266
        %v425 = vmul.f32 %v422, %v271
        %429 = vrot.lane.b32.xlu0 %v423, 64
        %v430 = vpop.permute.xlu0 %429
        %431 = vrot.lane.b32.xlu0 %v424, 64
        %v432 = vpop.permute.xlu0 %431
        %433 = vrot.lane.b32.xlu0 %v425, 64
        %v434 = vpop.permute.xlu0 %433
        %vm435 = vcmask 523264
        %v436 = vsel %vm435, %v430, %v432
        %v437 = vsel %vm435, %v432, %v434
        %v440 = vadd.f32 %v399, %v436
        %v441 = vadd.f32 %v400, %v437
        %s442 = sld [smem:[#allocation6 + $0x4d]]
        %v443 = vstv %s442
        %v444 = vmul.f32 %v443, %v282
        %v445 = vmul.f32 %v443, %v278
        %v446 = vmul.f32 %v443, %v283
        %450 = vrot.lane.b32.xlu0 %v444, 64
        %v451 = vpop.permute.xlu0 %450
        %452 = vrot.lane.b32.xlu0 %v445, 64
        %v453 = vpop.permute.xlu0 %452
        %454 = vrot.lane.b32.xlu0 %v446, 64
        %v455 = vpop.permute.xlu0 %454
        %v456 = vsel %vm435, %v451, %v453
        %v457 = vsel %vm435, %v453, %v455
        %v460 = vadd.f32 %v419, %v456
        %v461 = vadd.f32 %v420, %v457
        %s462 = sld [smem:[#allocation6 + $0x23]]
        %v463 = vstv %s462
        %v464 = vmul.f32 %v463, %v270
        %v465 = vmul.f32 %v463, %v266
        %v466 = vmul.f32 %v463, %v271
        %470 = vrot.lane.b32.xlu0 %v464, 48
        %v471 = vpop.permute.xlu0 %470
        %472 = vrot.lane.b32.xlu0 %v465, 48
        %v473 = vpop.permute.xlu0 %472
        %474 = vrot.lane.b32.xlu0 %v466, 48
        %v475 = vpop.permute.xlu0 %474
        %vm476 = vcmask 392192
        %v477 = vsel %vm476, %v471, %v473
        %v478 = vsel %vm476, %v473, %v475
        %v481 = vadd.f32 %v440, %v477
        %v482 = vadd.f32 %v441, %v478
        %s483 = sld [smem:[#allocation6 + $0x54]]
        %v484 = vstv %s483
        %v485 = vmul.f32 %v484, %v282
        %v486 = vmul.f32 %v484, %v278
        %v487 = vmul.f32 %v484, %v283
        %491 = vrot.lane.b32.xlu0 %v485, 48
        %v492 = vpop.permute.xlu0 %491
        %493 = vrot.lane.b32.xlu0 %v486, 48
        %v494 = vpop.permute.xlu0 %493
        %495 = vrot.lane.b32.xlu0 %v487, 48
        %v496 = vpop.permute.xlu0 %495
        %v497 = vsel %vm476, %v492, %v494
        %v498 = vsel %vm476, %v494, %v496
        %v501 = vadd.f32 %v460, %v497
        %v502 = vadd.f32 %v461, %v498
        %s503 = sld [smem:[#allocation6 + $0x2a]]
        %v504 = vstv %s503
        %v505 = vmul.f32 %v504, %v270
        %v506 = vmul.f32 %v504, %v266
        %v507 = vmul.f32 %v504, %v271
        %511 = vrot.lane.b32.xlu0 %v505, 32
        %v512 = vpop.permute.xlu0 %511
        %513 = vrot.lane.b32.xlu0 %v506, 32
        %v514 = vpop.permute.xlu0 %513
        %515 = vrot.lane.b32.xlu0 %v507, 32
        %v516 = vpop.permute.xlu0 %515
        %vm517 = vcmask 261120
        %v518 = vsel %vm517, %v512, %v514
        %v519 = vsel %vm517, %v514, %v516
        %v522 = vadd.f32 %v481, %v518
        %v523 = vadd.f32 %v482, %v519
        %s524 = sld [smem:[#allocation6 + $0x5b]]
        %v525 = vstv %s524
        %v526 = vmul.f32 %v525, %v282
        %v527 = vmul.f32 %v525, %v278
        %v528 = vmul.f32 %v525, %v283
        %532 = vrot.lane.b32.xlu0 %v526, 32
        %v533 = vpop.permute.xlu0 %532
        %534 = vrot.lane.b32.xlu0 %v527, 32
        %v535 = vpop.permute.xlu0 %534
        %536 = vrot.lane.b32.xlu0 %v528, 32
        %v537 = vpop.permute.xlu0 %536
        %v538 = vsel %vm517, %v533, %v535
        %v539 = vsel %vm517, %v535, %v537
        %v542 = vadd.f32 %v501, %v538
        %v543 = vadd.f32 %v502, %v539
        %v544 = vmul.f32 %v284, %v522
        %v545 = vmul.f32 %v285, %v523
        %v546 = vadd.f32 %v544, 0.0
        %v547 = vadd.f32 %v545, 0.0
        %v548 = vmul.f32 %v284, %v542
        %v549 = vmul.f32 %v285, %v543
        %v550 = vadd.f32 %v548, 0.0
        %v551 = vadd.f32 %v549, 0.0
        %s552 = sld [smem:[#allocation6 + $0x1]]
        %v553 = vstv %s552
        %v554 = vmul.f32 %v553, %v270
        %v555 = vmul.f32 %v553, %v266
        %v556 = vmul.f32 %v553, %v271
        %v557 = vadd.f32 %v554, 0.0
        %v558 = vadd.f32 %v555, 0.0
        %v559 = vadd.f32 %v556, 0.0
        %s560 = sld [smem:[#allocation6 + $0x32]]
        %v561 = vstv %s560
        %v562 = vmul.f32 %v561, %v282
        %v563 = vmul.f32 %v561, %v278
        %v564 = vmul.f32 %v561, %v283
        %v565 = vadd.f32 %v562, 0.0
        %v566 = vadd.f32 %v563, 0.0
        %v567 = vadd.f32 %v564, 0.0
        %s568 = sld [smem:[#allocation6 + $0x8]]
        %v569 = vstv %s568
        %v570 = vmul.f32 %v569, %v270
        %v571 = vmul.f32 %v569, %v266
        %v572 = vmul.f32 %v569, %v271
        %576 = vrot.lane.b32.xlu0 %v570, 112
        %v577 = vpop.permute.xlu0 %576
        %578 = vrot.lane.b32.xlu0 %v571, 112
        %v579 = vpop.permute.xlu0 %578
        %580 = vrot.lane.b32.xlu0 %v572, 112
        %v581 = vpop.permute.xlu0 %580
        %v582 = vsel %vm312, %v577, %v579
        %v583 = vsel %vm312, %v579, %v581
        %v587 = vadd.f32 %v557, %v582
        %v588 = vadd.f32 %v558, %v583
        %v589 = vadd.f32 %v559, %v581
        %s590 = sld [smem:[#allocation6 + $0x39]]
        %v591 = vstv %s590
        %v592 = vmul.f32 %v591, %v282
        %v593 = vmul.f32 %v591, %v278
        %v594 = vmul.f32 %v591, %v283
        %598 = vrot.lane.b32.xlu0 %v592, 112
        %v599 = vpop.permute.xlu0 %598
        %600 = vrot.lane.b32.xlu0 %v593, 112
        %v601 = vpop.permute.xlu0 %600
        %602 = vrot.lane.b32.xlu0 %v594, 112
        %v603 = vpop.permute.xlu0 %602
        %v604 = vsel %vm312, %v599, %v601
        %v605 = vsel %vm312, %v601, %v603
        %v609 = vadd.f32 %v565, %v604
        %v610 = vadd.f32 %v566, %v605
        %v611 = vadd.f32 %v567, %v603
        %s612 = sld [smem:[#allocation6 + $0xf]]
        %v613 = vstv %s612
        %v614 = vmul.f32 %v613, %v270
        %v615 = vmul.f32 %v613, %v266
        %v616 = vmul.f32 %v613, %v271
        %620 = vrot.lane.b32.xlu0 %v614, 96
        %v621 = vpop.permute.xlu0 %620
        %622 = vrot.lane.b32.xlu0 %v615, 96
        %v623 = vpop.permute.xlu0 %622
        %624 = vrot.lane.b32.xlu0 %v616, 96
        %v625 = vpop.permute.xlu0 %624
        %v626 = vsel %vm353, %v621, %v623
        %v627 = vsel %vm353, %v623, %v625
        %v631 = vadd.f32 %v587, %v626
        %v632 = vadd.f32 %v588, %v627
        %v633 = vadd.f32 %v589, %v625
        %s634 = sld [smem:[#allocation6 + $0x40]]
        %v635 = vstv %s634
        %v636 = vmul.f32 %v635, %v282
        %v637 = vmul.f32 %v635, %v278
        %v638 = vmul.f32 %v635, %v283
        %642 = vrot.lane.b32.xlu0 %v636, 96
        %v643 = vpop.permute.xlu0 %642
        %644 = vrot.lane.b32.xlu0 %v637, 96
        %v645 = vpop.permute.xlu0 %644
        %646 = vrot.lane.b32.xlu0 %v638, 96
        %v647 = vpop.permute.xlu0 %646
        %v648 = vsel %vm353, %v643, %v645
        %v649 = vsel %vm353, %v645, %v647
        %v653 = vadd.f32 %v609, %v648
        %v654 = vadd.f32 %v610, %v649
        %v655 = vadd.f32 %v611, %v647
        %s656 = sld [smem:[#allocation6 + $0x16]]
        %v657 = vstv %s656
        %v658 = vmul.f32 %v657, %v270
        %v659 = vmul.f32 %v657, %v266
        %v660 = vmul.f32 %v657, %v271
        %664 = vrot.lane.b32.xlu0 %v658, 80
        %v665 = vpop.permute.xlu0 %664
        %666 = vrot.lane.b32.xlu0 %v659, 80
        %v667 = vpop.permute.xlu0 %666
        %668 = vrot.lane.b32.xlu0 %v660, 80
        %v669 = vpop.permute.xlu0 %668
        %v670 = vsel %vm394, %v665, %v667
        %v671 = vsel %vm394, %v667, %v669
        %v675 = vadd.f32 %v631, %v670
        %v676 = vadd.f32 %v632, %v671
        %v677 = vadd.f32 %v633, %v669
        %s678 = sld [smem:[#allocation6 + $0x47]]
        %v679 = vstv %s678
        %v680 = vmul.f32 %v679, %v282
        %v681 = vmul.f32 %v679, %v278
        %v682 = vmul.f32 %v679, %v283
        %686 = vrot.lane.b32.xlu0 %v680, 80
        %v687 = vpop.permute.xlu0 %686
        %688 = vrot.lane.b32.xlu0 %v681, 80
        %v689 = vpop.permute.xlu0 %688
        %690 = vrot.lane.b32.xlu0 %v682, 80
        %v691 = vpop.permute.xlu0 %690
        %v692 = vsel %vm394, %v687, %v689
        %v693 = vsel %vm394, %v689, %v691
        %v697 = vadd.f32 %v653, %v692
        %v698 = vadd.f32 %v654, %v693
        %v699 = vadd.f32 %v655, %v691
        %s700 = sld [smem:[#allocation6 + $0x1d]]
        %v701 = vstv %s700
        %v702 = vmul.f32 %v701, %v270
        %v703 = vmul.f32 %v701, %v266
        %v704 = vmul.f32 %v701, %v271
        %708 = vrot.lane.b32.xlu0 %v702, 64
        %v709 = vpop.permute.xlu0 %708
        %710 = vrot.lane.b32.xlu0 %v703, 64
        %v711 = vpop.permute.xlu0 %710
        %712 = vrot.lane.b32.xlu0 %v704, 64
        %v713 = vpop.permute.xlu0 %712
        %v714 = vsel %vm435, %v709, %v711
        %v715 = vsel %vm435, %v711, %v713
        %v719 = vadd.f32 %v675, %v714
        %v720 = vadd.f32 %v676, %v715
        %v721 = vadd.f32 %v677, %v713
        %s722 = sld [smem:[#allocation6 + $0x4e]]
        %v723 = vstv %s722
        %v724 = vmul.f32 %v723, %v282
        %v725 = vmul.f32 %v723, %v278
        %v726 = vmul.f32 %v723, %v283
        %730 = vrot.lane.b32.xlu0 %v724, 64
        %v731 = vpop.permute.xlu0 %730
        %732 = vrot.lane.b32.xlu0 %v725, 64
        %v733 = vpop.permute.xlu0 %732
        %734 = vrot.lane.b32.xlu0 %v726, 64
        %v735 = vpop.permute.xlu0 %734
        %v736 = vsel %vm435, %v731, %v733
        %v737 = vsel %vm435, %v733, %v735
        %v741 = vadd.f32 %v697, %v736
        %v742 = vadd.f32 %v698, %v737
        %v743 = vadd.f32 %v699, %v735
        %s744 = sld [smem:[#allocation6 + $0x24]]
        %v745 = vstv %s744
        %v746 = vmul.f32 %v745, %v270
        %v747 = vmul.f32 %v745, %v266
        %v748 = vmul.f32 %v745, %v271
        %752 = vrot.lane.b32.xlu0 %v746, 48
        %v753 = vpop.permute.xlu0 %752
        %754 = vrot.lane.b32.xlu0 %v747, 48
        %v755 = vpop.permute.xlu0 %754
        %756 = vrot.lane.b32.xlu0 %v748, 48
        %v757 = vpop.permute.xlu0 %756
        %v758 = vsel %vm476, %v753, %v755
        %v759 = vsel %vm476, %v755, %v757
        %v763 = vadd.f32 %v719, %v758
        %v764 = vadd.f32 %v720, %v759
        %v765 = vadd.f32 %v721, %v757
        %s766 = sld [smem:[#allocation6 + $0x55]]
        %v767 = vstv %s766
        %v768 = vmul.f32 %v767, %v282
        %v769 = vmul.f32 %v767, %v278
        %v770 = vmul.f32 %v767, %v283
        %774 = vrot.lane.b32.xlu0 %v768, 48
        %v775 = vpop.permute.xlu0 %774
        %776 = vrot.lane.b32.xlu0 %v769, 48
        %v777 = vpop.permute.xlu0 %776
        %778 = vrot.lane.b32.xlu0 %v770, 48
        %v779 = vpop.permute.xlu0 %778
        %v780 = vsel %vm476, %v775, %v777
        %v781 = vsel %vm476, %v777, %v779
        %v785 = vadd.f32 %v741, %v780
        %v786 = vadd.f32 %v742, %v781
        %v787 = vadd.f32 %v743, %v779
        %s788 = sld [smem:[#allocation6 + $0x2b]]
        %v789 = vstv %s788
        %v790 = vmul.f32 %v789, %v270
        %v791 = vmul.f32 %v789, %v266
        %v792 = vmul.f32 %v789, %v271
        %796 = vrot.lane.b32.xlu0 %v790, 32
        %v797 = vpop.permute.xlu0 %796
        %798 = vrot.lane.b32.xlu0 %v791, 32
        %v799 = vpop.permute.xlu0 %798
        %800 = vrot.lane.b32.xlu0 %v792, 32
        %v801 = vpop.permute.xlu0 %800
        %v802 = vsel %vm517, %v797, %v799
        %v803 = vsel %vm517, %v799, %v801
        %v807 = vadd.f32 %v763, %v802
        %v808 = vadd.f32 %v764, %v803
        %v809 = vadd.f32 %v765, %v801
        %s810 = sld [smem:[#allocation6 + $0x5c]]
        %v811 = vstv %s810
        %v812 = vmul.f32 %v811, %v282
        %v813 = vmul.f32 %v811, %v278
        %v814 = vmul.f32 %v811, %v283
        %818 = vrot.lane.b32.xlu0 %v812, 32
        %v819 = vpop.permute.xlu0 %818
        %820 = vrot.lane.b32.xlu0 %v813, 32
        %v821 = vpop.permute.xlu0 %820
        %822 = vrot.lane.b32.xlu0 %v814, 32
        %v823 = vpop.permute.xlu0 %822
        %v824 = vsel %vm517, %v819, %v821
        %v825 = vsel %vm517, %v821, %v823
        %v829 = vadd.f32 %v785, %v824
        %v830 = vadd.f32 %v786, %v825
        %v831 = vadd.f32 %v787, %v823
        %v835 = vrot.slane %v807, 7
        %v836 = vrot.slane %v808, 7
        %v837 = vrot.slane %v809, 7
        %838 = vrot.lane.b32.xlu0 %v835, 127
        %v839 = vpop.permute.xlu0 %838
        %840 = vrot.lane.b32.xlu0 %v836, 127
        %v841 = vpop.permute.xlu0 %840
        %842 = vrot.lane.b32.xlu0 %v837, 127
        %v843 = vpop.permute.xlu0 %842
        %vm844 = vcmask 1039360
        %v845 = vsel %vm844, %v839, %v841
        %v846 = vsel %vm844, %v841, %v843
        %v849 = vmul.f32 %v284, %v845
        %v850 = vmul.f32 %v285, %v846
        %v853 = vrot.slane %v849, 1
        %v854 = vrot.slane %v850, 1
        %v857 = vadd.f32 %v546, %v853
        %v858 = vadd.f32 %v547, %v854
        %v862 = vrot.slane %v829, 7
        %v863 = vrot.slane %v830, 7
        %v864 = vrot.slane %v831, 7
        %865 = vrot.lane.b32.xlu0 %v862, 127
        %v866 = vpop.permute.xlu0 %865
        %867 = vrot.lane.b32.xlu0 %v863, 127
        %v868 = vpop.permute.xlu0 %867
        %869 = vrot.lane.b32.xlu0 %v864, 127
        %v870 = vpop.permute.xlu0 %869
        %v871 = vsel %vm844, %v866, %v868
        %v872 = vsel %vm844, %v868, %v870
        %v875 = vmul.f32 %v284, %v871
        %v876 = vmul.f32 %v285, %v872
        %v879 = vrot.slane %v875, 1
        %v880 = vrot.slane %v876, 1
        %v883 = vadd.f32 %v550, %v879
        %v884 = vadd.f32 %v551, %v880
        %s885 = sld [smem:[#allocation6 + $0x2]]
        %v886 = vstv %s885
        %v887 = vmul.f32 %v886, %v270
        %v888 = vmul.f32 %v886, %v266
        %v889 = vmul.f32 %v886, %v271
        %v890 = vadd.f32 %v887, 0.0
        %v891 = vadd.f32 %v888, 0.0
        %v892 = vadd.f32 %v889, 0.0
        %s893 = sld [smem:[#allocation6 + $0x33]]
        %v894 = vstv %s893
        %v895 = vmul.f32 %v894, %v282
        %v896 = vmul.f32 %v894, %v278
        %v897 = vmul.f32 %v894, %v283
        %v898 = vadd.f32 %v895, 0.0
        %v899 = vadd.f32 %v896, 0.0
        %v900 = vadd.f32 %v897, 0.0
        %s901 = sld [smem:[#allocation6 + $0x9]]
        %v902 = vstv %s901
        %v903 = vmul.f32 %v902, %v270
        %v904 = vmul.f32 %v902, %v266
        %v905 = vmul.f32 %v902, %v271
        %909 = vrot.lane.b32.xlu0 %v903, 112
        %v910 = vpop.permute.xlu0 %909
        %911 = vrot.lane.b32.xlu0 %v904, 112
        %v912 = vpop.permute.xlu0 %911
        %913 = vrot.lane.b32.xlu0 %v905, 112
        %v914 = vpop.permute.xlu0 %913
        %v915 = vsel %vm312, %v910, %v912
        %v916 = vsel %vm312, %v912, %v914
        %v920 = vadd.f32 %v890, %v915
        %v921 = vadd.f32 %v891, %v916
        %v922 = vadd.f32 %v892, %v914
        %s923 = sld [smem:[#allocation6 + $0x3a]]
        %v924 = vstv %s923
        %v925 = vmul.f32 %v924, %v282
        %v926 = vmul.f32 %v924, %v278
        %v927 = vmul.f32 %v924, %v283
        %931 = vrot.lane.b32.xlu0 %v925, 112
        %v932 = vpop.permute.xlu0 %931
        %933 = vrot.lane.b32.xlu0 %v926, 112
        %v934 = vpop.permute.xlu0 %933
        %935 = vrot.lane.b32.xlu0 %v927, 112
        %v936 = vpop.permute.xlu0 %935
        %v937 = vsel %vm312, %v932, %v934
        %v938 = vsel %vm312, %v934, %v936
        %v942 = vadd.f32 %v898, %v937
        %v943 = vadd.f32 %v899, %v938
        %v944 = vadd.f32 %v900, %v936
        %s945 = sld [smem:[#allocation6 + $0x10]]
        %v946 = vstv %s945
        %v947 = vmul.f32 %v946, %v270
        %v948 = vmul.f32 %v946, %v266
        %v949 = vmul.f32 %v946, %v271
        %953 = vrot.lane.b32.xlu0 %v947, 96
        %v954 = vpop.permute.xlu0 %953
        %955 = vrot.lane.b32.xlu0 %v948, 96
        %v956 = vpop.permute.xlu0 %955
        %957 = vrot.lane.b32.xlu0 %v949, 96
        %v958 = vpop.permute.xlu0 %957
        %v959 = vsel %vm353, %v954, %v956
        %v960 = vsel %vm353, %v956, %v958
        %v964 = vadd.f32 %v920, %v959
        %v965 = vadd.f32 %v921, %v960
        %v966 = vadd.f32 %v922, %v958
        %s967 = sld [smem:[#allocation6 + $0x41]]
        %v968 = vstv %s967
        %v969 = vmul.f32 %v968, %v282
        %v970 = vmul.f32 %v968, %v278
        %v971 = vmul.f32 %v968, %v283
        %975 = vrot.lane.b32.xlu0 %v969, 96
        %v976 = vpop.permute.xlu0 %975
        %977 = vrot.lane.b32.xlu0 %v970, 96
        %v978 = vpop.permute.xlu0 %977
        %979 = vrot.lane.b32.xlu0 %v971, 96
        %v980 = vpop.permute.xlu0 %979
        %v981 = vsel %vm353, %v976, %v978
        %v982 = vsel %vm353, %v978, %v980
        %v986 = vadd.f32 %v942, %v981
        %v987 = vadd.f32 %v943, %v982
        %v988 = vadd.f32 %v944, %v980
        %s989 = sld [smem:[#allocation6 + $0x17]]
        %v990 = vstv %s989
        %v991 = vmul.f32 %v990, %v270
        %v992 = vmul.f32 %v990, %v266
        %v993 = vmul.f32 %v990, %v271
        %997 = vrot.lane.b32.xlu0 %v991, 80
        %v998 = vpop.permute.xlu0 %997
        %999 = vrot.lane.b32.xlu0 %v992, 80
        %v1000 = vpop.permute.xlu0 %999
        %1001 = vrot.lane.b32.xlu0 %v993, 80
        %v1002 = vpop.permute.xlu0 %1001
        %v1003 = vsel %vm394, %v998, %v1000
        %v1004 = vsel %vm394, %v1000, %v1002
        %v1008 = vadd.f32 %v964, %v1003
        %v1009 = vadd.f32 %v965, %v1004
        %v1010 = vadd.f32 %v966, %v1002
        %s1011 = sld [smem:[#allocation6 + $0x48]]
        %v1012 = vstv %s1011
        %v1013 = vmul.f32 %v1012, %v282
        %v1014 = vmul.f32 %v1012, %v278
        %v1015 = vmul.f32 %v1012, %v283
        %1019 = vrot.lane.b32.xlu0 %v1013, 80
        %v1020 = vpop.permute.xlu0 %1019
        %1021 = vrot.lane.b32.xlu0 %v1014, 80
        %v1022 = vpop.permute.xlu0 %1021
        %1023 = vrot.lane.b32.xlu0 %v1015, 80
        %v1024 = vpop.permute.xlu0 %1023
        %v1025 = vsel %vm394, %v1020, %v1022
        %v1026 = vsel %vm394, %v1022, %v1024
        %v1030 = vadd.f32 %v986, %v1025
        %v1031 = vadd.f32 %v987, %v1026
        %v1032 = vadd.f32 %v988, %v1024
        %s1033 = sld [smem:[#allocation6 + $0x1e]]
        %v1034 = vstv %s1033
        %v1035 = vmul.f32 %v1034, %v270
        %v1036 = vmul.f32 %v1034, %v266
        %v1037 = vmul.f32 %v1034, %v271
        %1041 = vrot.lane.b32.xlu0 %v1035, 64
        %v1042 = vpop.permute.xlu0 %1041
        %1043 = vrot.lane.b32.xlu0 %v1036, 64
        %v1044 = vpop.permute.xlu0 %1043
        %1045 = vrot.lane.b32.xlu0 %v1037, 64
        %v1046 = vpop.permute.xlu0 %1045
        %v1047 = vsel %vm435, %v1042, %v1044
        %v1048 = vsel %vm435, %v1044, %v1046
        %v1052 = vadd.f32 %v1008, %v1047
        %v1053 = vadd.f32 %v1009, %v1048
        %v1054 = vadd.f32 %v1010, %v1046
        %s1055 = sld [smem:[#allocation6 + $0x4f]]
        %v1056 = vstv %s1055
        %v1057 = vmul.f32 %v1056, %v282
        %v1058 = vmul.f32 %v1056, %v278
        %v1059 = vmul.f32 %v1056, %v283
        %1063 = vrot.lane.b32.xlu0 %v1057, 64
        %v1064 = vpop.permute.xlu0 %1063
        %1065 = vrot.lane.b32.xlu0 %v1058, 64
        %v1066 = vpop.permute.xlu0 %1065
        %1067 = vrot.lane.b32.xlu0 %v1059, 64
        %v1068 = vpop.permute.xlu0 %1067
        %v1069 = vsel %vm435, %v1064, %v1066
        %v1070 = vsel %vm435, %v1066, %v1068
        %v1074 = vadd.f32 %v1030, %v1069
        %v1075 = vadd.f32 %v1031, %v1070
        %v1076 = vadd.f32 %v1032, %v1068
        %s1077 = sld [smem:[#allocation6 + $0x25]]
        %v1078 = vstv %s1077
        %v1079 = vmul.f32 %v1078, %v270
        %v1080 = vmul.f32 %v1078, %v266
        %v1081 = vmul.f32 %v1078, %v271
        %1085 = vrot.lane.b32.xlu0 %v1079, 48
        %v1086 = vpop.permute.xlu0 %1085
        %1087 = vrot.lane.b32.xlu0 %v1080, 48
        %v1088 = vpop.permute.xlu0 %1087
        %1089 = vrot.lane.b32.xlu0 %v1081, 48
        %v1090 = vpop.permute.xlu0 %1089
        %v1091 = vsel %vm476, %v1086, %v1088
        %v1092 = vsel %vm476, %v1088, %v1090
        %v1096 = vadd.f32 %v1052, %v1091
        %v1097 = vadd.f32 %v1053, %v1092
        %v1098 = vadd.f32 %v1054, %v1090
        %s1099 = sld [smem:[#allocation6 + $0x56]]
        %v1100 = vstv %s1099
        %v1101 = vmul.f32 %v1100, %v282
        %v1102 = vmul.f32 %v1100, %v278
        %v1103 = vmul.f32 %v1100, %v283
        %1107 = vrot.lane.b32.xlu0 %v1101, 48
        %v1108 = vpop.permute.xlu0 %1107
        %1109 = vrot.lane.b32.xlu0 %v1102, 48
        %v1110 = vpop.permute.xlu0 %1109
        %1111 = vrot.lane.b32.xlu0 %v1103, 48
        %v1112 = vpop.permute.xlu0 %1111
        %v1113 = vsel %vm476, %v1108, %v1110
        %v1114 = vsel %vm476, %v1110, %v1112
        %v1118 = vadd.f32 %v1074, %v1113
        %v1119 = vadd.f32 %v1075, %v1114
        %v1120 = vadd.f32 %v1076, %v1112
        %s1121 = sld [smem:[#allocation6 + $0x2c]]
        %v1122 = vstv %s1121
        %v1123 = vmul.f32 %v1122, %v270
        %v1124 = vmul.f32 %v1122, %v266
        %v1125 = vmul.f32 %v1122, %v271
        %1129 = vrot.lane.b32.xlu0 %v1123, 32
        %v1130 = vpop.permute.xlu0 %1129
        %1131 = vrot.lane.b32.xlu0 %v1124, 32
        %v1132 = vpop.permute.xlu0 %1131
        %1133 = vrot.lane.b32.xlu0 %v1125, 32
        %v1134 = vpop.permute.xlu0 %1133
        %v1135 = vsel %vm517, %v1130, %v1132
        %v1136 = vsel %vm517, %v1132, %v1134
        %v1140 = vadd.f32 %v1096, %v1135
        %v1141 = vadd.f32 %v1097, %v1136
        %v1142 = vadd.f32 %v1098, %v1134
        %s1143 = sld [smem:[#allocation6 + $0x5d]]
        %v1144 = vstv %s1143
        %v1145 = vmul.f32 %v1144, %v282
        %v1146 = vmul.f32 %v1144, %v278
        %v1147 = vmul.f32 %v1144, %v283
        %1151 = vrot.lane.b32.xlu0 %v1145, 32
        %v1152 = vpop.permute.xlu0 %1151
        %1153 = vrot.lane.b32.xlu0 %v1146, 32
        %v1154 = vpop.permute.xlu0 %1153
        %1155 = vrot.lane.b32.xlu0 %v1147, 32
        %v1156 = vpop.permute.xlu0 %1155
        %v1157 = vsel %vm517, %v1152, %v1154
        %v1158 = vsel %vm517, %v1154, %v1156
        %v1162 = vadd.f32 %v1118, %v1157
        %v1163 = vadd.f32 %v1119, %v1158
        %v1164 = vadd.f32 %v1120, %v1156
        %v1168 = vrot.slane %v1140, 6
        %v1169 = vrot.slane %v1141, 6
        %v1170 = vrot.slane %v1142, 6
        %1171 = vrot.lane.b32.xlu0 %v1168, 126
        %v1172 = vpop.permute.xlu0 %1171
        %1173 = vrot.lane.b32.xlu0 %v1169, 126
        %v1174 = vpop.permute.xlu0 %1173
        %1175 = vrot.lane.b32.xlu0 %v1170, 126
        %v1176 = vpop.permute.xlu0 %1175
        %vm1177 = vcmask 1031168
        %v1178 = vsel %vm1177, %v1172, %v1174
        %v1179 = vsel %vm1177, %v1174, %v1176
        %v1182 = vmul.f32 %v284, %v1178
        %v1183 = vmul.f32 %v285, %v1179
        %v1186 = vrot.slane %v1182, 2
        %v1187 = vrot.slane %v1183, 2
        %v1190 = vadd.f32 %v857, %v1186
        %v1191 = vadd.f32 %v858, %v1187
        %v1195 = vrot.slane %v1162, 6
        %v1196 = vrot.slane %v1163, 6
        %v1197 = vrot.slane %v1164, 6
        %1198 = vrot.lane.b32.xlu0 %v1195, 126
        %v1199 = vpop.permute.xlu0 %1198
        %1200 = vrot.lane.b32.xlu0 %v1196, 126
        %v1201 = vpop.permute.xlu0 %1200
        %1202 = vrot.lane.b32.xlu0 %v1197, 126
        %v1203 = vpop.permute.xlu0 %1202
        %v1204 = vsel %vm1177, %v1199, %v1201
        %v1205 = vsel %vm1177, %v1201, %v1203
        %v1208 = vmul.f32 %v284, %v1204
        %v1209 = vmul.f32 %v285, %v1205
        %v1212 = vrot.slane %v1208, 2
        %v1213 = vrot.slane %v1209, 2
        %v1216 = vadd.f32 %v883, %v1212
        %v1217 = vadd.f32 %v884, %v1213
        %s1218 = sld [smem:[#allocation6 + $0x3]]
        %v1219 = vstv %s1218
        %v1220 = vmul.f32 %v1219, %v270
        %v1221 = vmul.f32 %v1219, %v266
        %v1222 = vmul.f32 %v1219, %v271
        %v1223 = vadd.f32 %v1220, 0.0
        %v1224 = vadd.f32 %v1221, 0.0
        %v1225 = vadd.f32 %v1222, 0.0
        %s1226 = sld [smem:[#allocation6 + $0x34]]
        %v1227 = vstv %s1226
        %v1228 = vmul.f32 %v1227, %v282
        %v1229 = vmul.f32 %v1227, %v278
        %v1230 = vmul.f32 %v1227, %v283
        %v1231 = vadd.f32 %v1228, 0.0
        %v1232 = vadd.f32 %v1229, 0.0
        %v1233 = vadd.f32 %v1230, 0.0
        %s1234 = sld [smem:[#allocation6 + $0xa]]
        %v1235 = vstv %s1234
        %v1236 = vmul.f32 %v1235, %v270
        %v1237 = vmul.f32 %v1235, %v266
        %v1238 = vmul.f32 %v1235, %v271
        %1242 = vrot.lane.b32.xlu0 %v1236, 112
        %v1243 = vpop.permute.xlu0 %1242
        %1244 = vrot.lane.b32.xlu0 %v1237, 112
        %v1245 = vpop.permute.xlu0 %1244
        %1246 = vrot.lane.b32.xlu0 %v1238, 112
        %v1247 = vpop.permute.xlu0 %1246
        %v1248 = vsel %vm312, %v1243, %v1245
        %v1249 = vsel %vm312, %v1245, %v1247
        %v1253 = vadd.f32 %v1223, %v1248
        %v1254 = vadd.f32 %v1224, %v1249
        %v1255 = vadd.f32 %v1225, %v1247
        %s1256 = sld [smem:[#allocation6 + $0x3b]]
        %v1257 = vstv %s1256
        %v1258 = vmul.f32 %v1257, %v282
        %v1259 = vmul.f32 %v1257, %v278
        %v1260 = vmul.f32 %v1257, %v283
        %1264 = vrot.lane.b32.xlu0 %v1258, 112
        %v1265 = vpop.permute.xlu0 %1264
        %1266 = vrot.lane.b32.xlu0 %v1259, 112
        %v1267 = vpop.permute.xlu0 %1266
        %1268 = vrot.lane.b32.xlu0 %v1260, 112
        %v1269 = vpop.permute.xlu0 %1268
        %v1270 = vsel %vm312, %v1265, %v1267
        %v1271 = vsel %vm312, %v1267, %v1269
        %v1275 = vadd.f32 %v1231, %v1270
        %v1276 = vadd.f32 %v1232, %v1271
        %v1277 = vadd.f32 %v1233, %v1269
        %s1278 = sld [smem:[#allocation6 + $0x11]]
        %v1279 = vstv %s1278
        %v1280 = vmul.f32 %v1279, %v270
        %v1281 = vmul.f32 %v1279, %v266
        %v1282 = vmul.f32 %v1279, %v271
        %1286 = vrot.lane.b32.xlu0 %v1280, 96
        %v1287 = vpop.permute.xlu0 %1286
        %1288 = vrot.lane.b32.xlu0 %v1281, 96
        %v1289 = vpop.permute.xlu0 %1288
        %1290 = vrot.lane.b32.xlu0 %v1282, 96
        %v1291 = vpop.permute.xlu0 %1290
        %v1292 = vsel %vm353, %v1287, %v1289
        %v1293 = vsel %vm353, %v1289, %v1291
        %v1297 = vadd.f32 %v1253, %v1292
        %v1298 = vadd.f32 %v1254, %v1293
        %v1299 = vadd.f32 %v1255, %v1291
        %s1300 = sld [smem:[#allocation6 + $0x42]]
        %v1301 = vstv %s1300
        %v1302 = vmul.f32 %v1301, %v282
        %v1303 = vmul.f32 %v1301, %v278
        %v1304 = vmul.f32 %v1301, %v283
        %1308 = vrot.lane.b32.xlu0 %v1302, 96
        %v1309 = vpop.permute.xlu0 %1308
        %1310 = vrot.lane.b32.xlu0 %v1303, 96
        %v1311 = vpop.permute.xlu0 %1310
        %1312 = vrot.lane.b32.xlu0 %v1304, 96
        %v1313 = vpop.permute.xlu0 %1312
        %v1314 = vsel %vm353, %v1309, %v1311
        %v1315 = vsel %vm353, %v1311, %v1313
        %v1319 = vadd.f32 %v1275, %v1314
        %v1320 = vadd.f32 %v1276, %v1315
        %v1321 = vadd.f32 %v1277, %v1313
        %s1322 = sld [smem:[#allocation6 + $0x18]]
        %v1323 = vstv %s1322
        %v1324 = vmul.f32 %v1323, %v270
        %v1325 = vmul.f32 %v1323, %v266
        %v1326 = vmul.f32 %v1323, %v271
        %1330 = vrot.lane.b32.xlu0 %v1324, 80
        %v1331 = vpop.permute.xlu0 %1330
        %1332 = vrot.lane.b32.xlu0 %v1325, 80
        %v1333 = vpop.permute.xlu0 %1332
        %1334 = vrot.lane.b32.xlu0 %v1326, 80
        %v1335 = vpop.permute.xlu0 %1334
        %v1336 = vsel %vm394, %v1331, %v1333
        %v1337 = vsel %vm394, %v1333, %v1335
        %v1341 = vadd.f32 %v1297, %v1336
        %v1342 = vadd.f32 %v1298, %v1337
        %v1343 = vadd.f32 %v1299, %v1335
        %s1344 = sld [smem:[#allocation6 + $0x49]]
        %v1345 = vstv %s1344
        %v1346 = vmul.f32 %v1345, %v282
        %v1347 = vmul.f32 %v1345, %v278
        %v1348 = vmul.f32 %v1345, %v283
        %1352 = vrot.lane.b32.xlu0 %v1346, 80
        %v1353 = vpop.permute.xlu0 %1352
        %1354 = vrot.lane.b32.xlu0 %v1347, 80
        %v1355 = vpop.permute.xlu0 %1354
        %1356 = vrot.lane.b32.xlu0 %v1348, 80
        %v1357 = vpop.permute.xlu0 %1356
        %v1358 = vsel %vm394, %v1353, %v1355
        %v1359 = vsel %vm394, %v1355, %v1357
        %v1363 = vadd.f32 %v1319, %v1358
        %v1364 = vadd.f32 %v1320, %v1359
        %v1365 = vadd.f32 %v1321, %v1357
        %s1366 = sld [smem:[#allocation6 + $0x1f]]
        %v1367 = vstv %s1366
        %v1368 = vmul.f32 %v1367, %v270
        %v1369 = vmul.f32 %v1367, %v266
        %v1370 = vmul.f32 %v1367, %v271
        %1374 = vrot.lane.b32.xlu0 %v1368, 64
        %v1375 = vpop.permute.xlu0 %1374
        %1376 = vrot.lane.b32.xlu0 %v1369, 64
        %v1377 = vpop.permute.xlu0 %1376
        %1378 = vrot.lane.b32.xlu0 %v1370, 64
        %v1379 = vpop.permute.xlu0 %1378
        %v1380 = vsel %vm435, %v1375, %v1377
        %v1381 = vsel %vm435, %v1377, %v1379
        %v1385 = vadd.f32 %v1341, %v1380
        %v1386 = vadd.f32 %v1342, %v1381
        %v1387 = vadd.f32 %v1343, %v1379
        %s1388 = sld [smem:[#allocation6 + $0x50]]
        %v1389 = vstv %s1388
        %v1390 = vmul.f32 %v1389, %v282
        %v1391 = vmul.f32 %v1389, %v278
        %v1392 = vmul.f32 %v1389, %v283
        %1396 = vrot.lane.b32.xlu0 %v1390, 64
        %v1397 = vpop.permute.xlu0 %1396
        %1398 = vrot.lane.b32.xlu0 %v1391, 64
        %v1399 = vpop.permute.xlu0 %1398
        %1400 = vrot.lane.b32.xlu0 %v1392, 64
        %v1401 = vpop.permute.xlu0 %1400
        %v1402 = vsel %vm435, %v1397, %v1399
        %v1403 = vsel %vm435, %v1399, %v1401
        %v1407 = vadd.f32 %v1363, %v1402
        %v1408 = vadd.f32 %v1364, %v1403
        %v1409 = vadd.f32 %v1365, %v1401
        %s1410 = sld [smem:[#allocation6 + $0x26]]
        %v1411 = vstv %s1410
        %v1412 = vmul.f32 %v1411, %v270
        %v1413 = vmul.f32 %v1411, %v266
        %v1414 = vmul.f32 %v1411, %v271
        %1418 = vrot.lane.b32.xlu0 %v1412, 48
        %v1419 = vpop.permute.xlu0 %1418
        %1420 = vrot.lane.b32.xlu0 %v1413, 48
        %v1421 = vpop.permute.xlu0 %1420
        %1422 = vrot.lane.b32.xlu0 %v1414, 48
        %v1423 = vpop.permute.xlu0 %1422
        %v1424 = vsel %vm476, %v1419, %v1421
        %v1425 = vsel %vm476, %v1421, %v1423
        %v1429 = vadd.f32 %v1385, %v1424
        %v1430 = vadd.f32 %v1386, %v1425
        %v1431 = vadd.f32 %v1387, %v1423
        %s1432 = sld [smem:[#allocation6 + $0x57]]
        %v1433 = vstv %s1432
        %v1434 = vmul.f32 %v1433, %v282
        %v1435 = vmul.f32 %v1433, %v278
        %v1436 = vmul.f32 %v1433, %v283
        %1440 = vrot.lane.b32.xlu0 %v1434, 48
        %v1441 = vpop.permute.xlu0 %1440
        %1442 = vrot.lane.b32.xlu0 %v1435, 48
        %v1443 = vpop.permute.xlu0 %1442
        %1444 = vrot.lane.b32.xlu0 %v1436, 48
        %v1445 = vpop.permute.xlu0 %1444
        %v1446 = vsel %vm476, %v1441, %v1443
        %v1447 = vsel %vm476, %v1443, %v1445
        %v1451 = vadd.f32 %v1407, %v1446
        %v1452 = vadd.f32 %v1408, %v1447
        %v1453 = vadd.f32 %v1409, %v1445
        %s1454 = sld [smem:[#allocation6 + $0x2d]]
        %v1455 = vstv %s1454
        %v1456 = vmul.f32 %v1455, %v270
        %v1457 = vmul.f32 %v1455, %v266
        %v1458 = vmul.f32 %v1455, %v271
        %1462 = vrot.lane.b32.xlu0 %v1456, 32
        %v1463 = vpop.permute.xlu0 %1462
        %1464 = vrot.lane.b32.xlu0 %v1457, 32
        %v1465 = vpop.permute.xlu0 %1464
        %1466 = vrot.lane.b32.xlu0 %v1458, 32
        %v1467 = vpop.permute.xlu0 %1466
        %v1468 = vsel %vm517, %v1463, %v1465
        %v1469 = vsel %vm517, %v1465, %v1467
        %v1473 = vadd.f32 %v1429, %v1468
        %v1474 = vadd.f32 %v1430, %v1469
        %v1475 = vadd.f32 %v1431, %v1467
        %s1476 = sld [smem:[#allocation6 + $0x5e]]
        %v1477 = vstv %s1476
        %v1478 = vmul.f32 %v1477, %v282
        %v1479 = vmul.f32 %v1477, %v278
        %v1480 = vmul.f32 %v1477, %v283
        %1484 = vrot.lane.b32.xlu0 %v1478, 32
        %v1485 = vpop.permute.xlu0 %1484
        %1486 = vrot.lane.b32.xlu0 %v1479, 32
        %v1487 = vpop.permute.xlu0 %1486
        %1488 = vrot.lane.b32.xlu0 %v1480, 32
        %v1489 = vpop.permute.xlu0 %1488
        %v1490 = vsel %vm517, %v1485, %v1487
        %v1491 = vsel %vm517, %v1487, %v1489
        %v1495 = vadd.f32 %v1451, %v1490
        %v1496 = vadd.f32 %v1452, %v1491
        %v1497 = vadd.f32 %v1453, %v1489
        %v1501 = vrot.slane %v1473, 5
        %v1502 = vrot.slane %v1474, 5
        %v1503 = vrot.slane %v1475, 5
        %1504 = vrot.lane.b32.xlu0 %v1501, 125
        %v1505 = vpop.permute.xlu0 %1504
        %1506 = vrot.lane.b32.xlu0 %v1502, 125
        %v1507 = vpop.permute.xlu0 %1506
        %1508 = vrot.lane.b32.xlu0 %v1503, 125
        %v1509 = vpop.permute.xlu0 %1508
        %vm1510 = vcmask 1022976
        %v1511 = vsel %vm1510, %v1505, %v1507
        %v1512 = vsel %vm1510, %v1507, %v1509
        %v1515 = vmul.f32 %v284, %v1511
        %v1516 = vmul.f32 %v285, %v1512
        %v1519 = vrot.slane %v1515, 3
        %v1520 = vrot.slane %v1516, 3
        %v1523 = vadd.f32 %v1190, %v1519
        %v1524 = vadd.f32 %v1191, %v1520
        %v1528 = vrot.slane %v1495, 5
        %v1529 = vrot.slane %v1496, 5
        %v1530 = vrot.slane %v1497, 5
        %1531 = vrot.lane.b32.xlu0 %v1528, 125
        %v1532 = vpop.permute.xlu0 %1531
        %1533 = vrot.lane.b32.xlu0 %v1529, 125
        %v1534 = vpop.permute.xlu0 %1533
        %1535 = vrot.lane.b32.xlu0 %v1530, 125
        %v1536 = vpop.permute.xlu0 %1535
        %v1537 = vsel %vm1510, %v1532, %v1534
        %v1538 = vsel %vm1510, %v1534, %v1536
        %v1541 = vmul.f32 %v284, %v1537
        %v1542 = vmul.f32 %v285, %v1538
        %v1545 = vrot.slane %v1541, 3
        %v1546 = vrot.slane %v1542, 3
        %v1549 = vadd.f32 %v1216, %v1545
        %v1550 = vadd.f32 %v1217, %v1546
        %s1551 = sld [smem:[#allocation6 + $0x4]]
        %v1552 = vstv %s1551
        %v1553 = vmul.f32 %v1552, %v270
        %v1554 = vmul.f32 %v1552, %v266
        %v1555 = vmul.f32 %v1552, %v271
        %v1556 = vadd.f32 %v1553, 0.0
        %v1557 = vadd.f32 %v1554, 0.0
        %v1558 = vadd.f32 %v1555, 0.0
        %s1559 = sld [smem:[#allocation6 + $0x35]]
        %v1560 = vstv %s1559
        %v1561 = vmul.f32 %v1560, %v282
        %v1562 = vmul.f32 %v1560, %v278
        %v1563 = vmul.f32 %v1560, %v283
        %v1564 = vadd.f32 %v1561, 0.0
        %v1565 = vadd.f32 %v1562, 0.0
        %v1566 = vadd.f32 %v1563, 0.0
        %s1567 = sld [smem:[#allocation6 + $0xb]]
        %v1568 = vstv %s1567
        %v1569 = vmul.f32 %v1568, %v270
        %v1570 = vmul.f32 %v1568, %v266
        %v1571 = vmul.f32 %v1568, %v271
        %1575 = vrot.lane.b32.xlu0 %v1569, 112
        %v1576 = vpop.permute.xlu0 %1575
        %1577 = vrot.lane.b32.xlu0 %v1570, 112
        %v1578 = vpop.permute.xlu0 %1577
        %1579 = vrot.lane.b32.xlu0 %v1571, 112
        %v1580 = vpop.permute.xlu0 %1579
        %v1581 = vsel %vm312, %v1576, %v1578
        %v1582 = vsel %vm312, %v1578, %v1580
        %v1586 = vadd.f32 %v1556, %v1581
        %v1587 = vadd.f32 %v1557, %v1582
        %v1588 = vadd.f32 %v1558, %v1580
        %s1589 = sld [smem:[#allocation6 + $0x3c]]
        %v1590 = vstv %s1589
        %v1591 = vmul.f32 %v1590, %v282
        %v1592 = vmul.f32 %v1590, %v278
        %v1593 = vmul.f32 %v1590, %v283
        %1597 = vrot.lane.b32.xlu0 %v1591, 112
        %v1598 = vpop.permute.xlu0 %1597
        %1599 = vrot.lane.b32.xlu0 %v1592, 112
        %v1600 = vpop.permute.xlu0 %1599
        %1601 = vrot.lane.b32.xlu0 %v1593, 112
        %v1602 = vpop.permute.xlu0 %1601
        %v1603 = vsel %vm312, %v1598, %v1600
        %v1604 = vsel %vm312, %v1600, %v1602
        %v1608 = vadd.f32 %v1564, %v1603
        %v1609 = vadd.f32 %v1565, %v1604
        %v1610 = vadd.f32 %v1566, %v1602
        %s1611 = sld [smem:[#allocation6 + $0x12]]
        %v1612 = vstv %s1611
        %v1613 = vmul.f32 %v1612, %v270
        %v1614 = vmul.f32 %v1612, %v266
        %v1615 = vmul.f32 %v1612, %v271
        %1619 = vrot.lane.b32.xlu0 %v1613, 96
        %v1620 = vpop.permute.xlu0 %1619
        %1621 = vrot.lane.b32.xlu0 %v1614, 96
        %v1622 = vpop.permute.xlu0 %1621
        %1623 = vrot.lane.b32.xlu0 %v1615, 96
        %v1624 = vpop.permute.xlu0 %1623
        %v1625 = vsel %vm353, %v1620, %v1622
        %v1626 = vsel %vm353, %v1622, %v1624
        %v1630 = vadd.f32 %v1586, %v1625
        %v1631 = vadd.f32 %v1587, %v1626
        %v1632 = vadd.f32 %v1588, %v1624
        %s1633 = sld [smem:[#allocation6 + $0x43]]
        %v1634 = vstv %s1633
        %v1635 = vmul.f32 %v1634, %v282
        %v1636 = vmul.f32 %v1634, %v278
        %v1637 = vmul.f32 %v1634, %v283
        %1641 = vrot.lane.b32.xlu0 %v1635, 96
        %v1642 = vpop.permute.xlu0 %1641
        %1643 = vrot.lane.b32.xlu0 %v1636, 96
        %v1644 = vpop.permute.xlu0 %1643
        %1645 = vrot.lane.b32.xlu0 %v1637, 96
        %v1646 = vpop.permute.xlu0 %1645
        %v1647 = vsel %vm353, %v1642, %v1644
        %v1648 = vsel %vm353, %v1644, %v1646
        %v1652 = vadd.f32 %v1608, %v1647
        %v1653 = vadd.f32 %v1609, %v1648
        %v1654 = vadd.f32 %v1610, %v1646
        %s1655 = sld [smem:[#allocation6 + $0x19]]
        %v1656 = vstv %s1655
        %v1657 = vmul.f32 %v1656, %v270
        %v1658 = vmul.f32 %v1656, %v266
        %v1659 = vmul.f32 %v1656, %v271
        %1663 = vrot.lane.b32.xlu0 %v1657, 80
        %v1664 = vpop.permute.xlu0 %1663
        %1665 = vrot.lane.b32.xlu0 %v1658, 80
        %v1666 = vpop.permute.xlu0 %1665
        %1667 = vrot.lane.b32.xlu0 %v1659, 80
        %v1668 = vpop.permute.xlu0 %1667
        %v1669 = vsel %vm394, %v1664, %v1666
        %v1670 = vsel %vm394, %v1666, %v1668
        %v1674 = vadd.f32 %v1630, %v1669
        %v1675 = vadd.f32 %v1631, %v1670
        %v1676 = vadd.f32 %v1632, %v1668
        %s1677 = sld [smem:[#allocation6 + $0x4a]]
        %v1678 = vstv %s1677
        %v1679 = vmul.f32 %v1678, %v282
        %v1680 = vmul.f32 %v1678, %v278
        %v1681 = vmul.f32 %v1678, %v283
        %1685 = vrot.lane.b32.xlu0 %v1679, 80
        %v1686 = vpop.permute.xlu0 %1685
        %1687 = vrot.lane.b32.xlu0 %v1680, 80
        %v1688 = vpop.permute.xlu0 %1687
        %1689 = vrot.lane.b32.xlu0 %v1681, 80
        %v1690 = vpop.permute.xlu0 %1689
        %v1691 = vsel %vm394, %v1686, %v1688
        %v1692 = vsel %vm394, %v1688, %v1690
        %v1696 = vadd.f32 %v1652, %v1691
        %v1697 = vadd.f32 %v1653, %v1692
        %v1698 = vadd.f32 %v1654, %v1690
        %s1699 = sld [smem:[#allocation6 + $0x20]]
        %v1700 = vstv %s1699
        %v1701 = vmul.f32 %v1700, %v270
        %v1702 = vmul.f32 %v1700, %v266
        %v1703 = vmul.f32 %v1700, %v271
        %1707 = vrot.lane.b32.xlu0 %v1701, 64
        %v1708 = vpop.permute.xlu0 %1707
        %1709 = vrot.lane.b32.xlu0 %v1702, 64
        %v1710 = vpop.permute.xlu0 %1709
        %1711 = vrot.lane.b32.xlu0 %v1703, 64
        %v1712 = vpop.permute.xlu0 %1711
        %v1713 = vsel %vm435, %v1708, %v1710
        %v1714 = vsel %vm435, %v1710, %v1712
        %v1718 = vadd.f32 %v1674, %v1713
        %v1719 = vadd.f32 %v1675, %v1714
        %v1720 = vadd.f32 %v1676, %v1712
        %s1721 = sld [smem:[#allocation6 + $0x51]]
        %v1722 = vstv %s1721
        %v1723 = vmul.f32 %v1722, %v282
        %v1724 = vmul.f32 %v1722, %v278
        %v1725 = vmul.f32 %v1722, %v283
        %1729 = vrot.lane.b32.xlu0 %v1723, 64
        %v1730 = vpop.permute.xlu0 %1729
        %1731 = vrot.lane.b32.xlu0 %v1724, 64
        %v1732 = vpop.permute.xlu0 %1731
        %1733 = vrot.lane.b32.xlu0 %v1725, 64
        %v1734 = vpop.permute.xlu0 %1733
        %v1735 = vsel %vm435, %v1730, %v1732
        %v1736 = vsel %vm435, %v1732, %v1734
        %v1740 = vadd.f32 %v1696, %v1735
        %v1741 = vadd.f32 %v1697, %v1736
        %v1742 = vadd.f32 %v1698, %v1734
        %s1743 = sld [smem:[#allocation6 + $0x27]]
        %v1744 = vstv %s1743
        %v1745 = vmul.f32 %v1744, %v270
        %v1746 = vmul.f32 %v1744, %v266
        %v1747 = vmul.f32 %v1744, %v271
        %1751 = vrot.lane.b32.xlu0 %v1745, 48
        %v1752 = vpop.permute.xlu0 %1751
        %1753 = vrot.lane.b32.xlu0 %v1746, 48
        %v1754 = vpop.permute.xlu0 %1753
        %1755 = vrot.lane.b32.xlu0 %v1747, 48
        %v1756 = vpop.permute.xlu0 %1755
        %v1757 = vsel %vm476, %v1752, %v1754
        %v1758 = vsel %vm476, %v1754, %v1756
        %v1762 = vadd.f32 %v1718, %v1757
        %v1763 = vadd.f32 %v1719, %v1758
        %v1764 = vadd.f32 %v1720, %v1756
        %s1765 = sld [smem:[#allocation6 + $0x58]]
        %v1766 = vstv %s1765
        %v1767 = vmul.f32 %v1766, %v282
        %v1768 = vmul.f32 %v1766, %v278
        %v1769 = vmul.f32 %v1766, %v283
        %1773 = vrot.lane.b32.xlu0 %v1767, 48
        %v1774 = vpop.permute.xlu0 %1773
        %1775 = vrot.lane.b32.xlu0 %v1768, 48
        %v1776 = vpop.permute.xlu0 %1775
        %1777 = vrot.lane.b32.xlu0 %v1769, 48
        %v1778 = vpop.permute.xlu0 %1777
        %v1779 = vsel %vm476, %v1774, %v1776
        %v1780 = vsel %vm476, %v1776, %v1778
        %v1784 = vadd.f32 %v1740, %v1779
        %v1785 = vadd.f32 %v1741, %v1780
        %v1786 = vadd.f32 %v1742, %v1778
        %s1787 = sld [smem:[#allocation6 + $0x2e]]
        %v1788 = vstv %s1787
        %v1789 = vmul.f32 %v1788, %v270
        %v1790 = vmul.f32 %v1788, %v266
        %v1791 = vmul.f32 %v1788, %v271
        %1795 = vrot.lane.b32.xlu0 %v1789, 32
        %v1796 = vpop.permute.xlu0 %1795
        %1797 = vrot.lane.b32.xlu0 %v1790, 32
        %v1798 = vpop.permute.xlu0 %1797
        %1799 = vrot.lane.b32.xlu0 %v1791, 32
        %v1800 = vpop.permute.xlu0 %1799
        %v1801 = vsel %vm517, %v1796, %v1798
        %v1802 = vsel %vm517, %v1798, %v1800
        %v1806 = vadd.f32 %v1762, %v1801
        %v1807 = vadd.f32 %v1763, %v1802
        %v1808 = vadd.f32 %v1764, %v1800
        %s1809 = sld [smem:[#allocation6 + $0x5f]]
        %v1810 = vstv %s1809
        %v1811 = vmul.f32 %v1810, %v282
        %v1812 = vmul.f32 %v1810, %v278
        %v1813 = vmul.f32 %v1810, %v283
        %1817 = vrot.lane.b32.xlu0 %v1811, 32
        %v1818 = vpop.permute.xlu0 %1817
        %1819 = vrot.lane.b32.xlu0 %v1812, 32
        %v1820 = vpop.permute.xlu0 %1819
        %1821 = vrot.lane.b32.xlu0 %v1813, 32
        %v1822 = vpop.permute.xlu0 %1821
        %v1823 = vsel %vm517, %v1818, %v1820
        %v1824 = vsel %vm517, %v1820, %v1822
        %v1828 = vadd.f32 %v1784, %v1823
        %v1829 = vadd.f32 %v1785, %v1824
        %v1830 = vadd.f32 %v1786, %v1822
        %v1834 = vrot.slane %v1806, 4
        %v1835 = vrot.slane %v1807, 4
        %v1836 = vrot.slane %v1808, 4
        %1837 = vrot.lane.b32.xlu0 %v1834, 124
        %v1838 = vpop.permute.xlu0 %1837
        %1839 = vrot.lane.b32.xlu0 %v1835, 124
        %v1840 = vpop.permute.xlu0 %1839
        %1841 = vrot.lane.b32.xlu0 %v1836, 124
        %v1842 = vpop.permute.xlu0 %1841
        %vm1843 = vcmask 1014784
        %v1844 = vsel %vm1843, %v1838, %v1840
        %v1845 = vsel %vm1843, %v1840, %v1842
        %v1848 = vmul.f32 %v284, %v1844
        %v1849 = vmul.f32 %v285, %v1845
        %v1852 = vrot.slane %v1848, 4
        %v1853 = vrot.slane %v1849, 4
        %v1856 = vadd.f32 %v1523, %v1852
        %v1857 = vadd.f32 %v1524, %v1853
        %v1861 = vrot.slane %v1828, 4
        %v1862 = vrot.slane %v1829, 4
        %v1863 = vrot.slane %v1830, 4
        %1864 = vrot.lane.b32.xlu0 %v1861, 124
        %v1865 = vpop.permute.xlu0 %1864
        %1866 = vrot.lane.b32.xlu0 %v1862, 124
        %v1867 = vpop.permute.xlu0 %1866
        %1868 = vrot.lane.b32.xlu0 %v1863, 124
        %v1869 = vpop.permute.xlu0 %1868
        %v1870 = vsel %vm1843, %v1865, %v1867
        %v1871 = vsel %vm1843, %v1867, %v1869
        %v1874 = vmul.f32 %v284, %v1870
        %v1875 = vmul.f32 %v285, %v1871
        %v1878 = vrot.slane %v1874, 4
        %v1879 = vrot.slane %v1875, 4
        %v1882 = vadd.f32 %v1549, %v1878
        %v1883 = vadd.f32 %v1550, %v1879
        %s1884 = sld [smem:[#allocation6 + $0x5]]
        %v1885 = vstv %s1884
        %v1886 = vmul.f32 %v1885, %v270
        %v1887 = vmul.f32 %v1885, %v266
        %v1888 = vmul.f32 %v1885, %v271
        %v1889 = vadd.f32 %v1886, 0.0
        %v1890 = vadd.f32 %v1887, 0.0
        %v1891 = vadd.f32 %v1888, 0.0
        %s1892 = sld [smem:[#allocation6 + $0x36]]
        %v1893 = vstv %s1892
        %v1894 = vmul.f32 %v1893, %v282
        %v1895 = vmul.f32 %v1893, %v278
        %v1896 = vmul.f32 %v1893, %v283
        %v1897 = vadd.f32 %v1894, 0.0
        %v1898 = vadd.f32 %v1895, 0.0
        %v1899 = vadd.f32 %v1896, 0.0
        %s1900 = sld [smem:[#allocation6 + $0xc]]
        %v1901 = vstv %s1900
        %v1902 = vmul.f32 %v1901, %v270
        %v1903 = vmul.f32 %v1901, %v266
        %v1904 = vmul.f32 %v1901, %v271
        %1908 = vrot.lane.b32.xlu0 %v1902, 112
        %v1909 = vpop.permute.xlu0 %1908
        %1910 = vrot.lane.b32.xlu0 %v1903, 112
        %v1911 = vpop.permute.xlu0 %1910
        %1912 = vrot.lane.b32.xlu0 %v1904, 112
        %v1913 = vpop.permute.xlu0 %1912
        %v1914 = vsel %vm312, %v1909, %v1911
        %v1915 = vsel %vm312, %v1911, %v1913
        %v1919 = vadd.f32 %v1889, %v1914
        %v1920 = vadd.f32 %v1890, %v1915
        %v1921 = vadd.f32 %v1891, %v1913
        %s1922 = sld [smem:[#allocation6 + $0x3d]]
        %v1923 = vstv %s1922
        %v1924 = vmul.f32 %v1923, %v282
        %v1925 = vmul.f32 %v1923, %v278
        %v1926 = vmul.f32 %v1923, %v283
        %1930 = vrot.lane.b32.xlu0 %v1924, 112
        %v1931 = vpop.permute.xlu0 %1930
        %1932 = vrot.lane.b32.xlu0 %v1925, 112
        %v1933 = vpop.permute.xlu0 %1932
        %1934 = vrot.lane.b32.xlu0 %v1926, 112
        %v1935 = vpop.permute.xlu0 %1934
        %v1936 = vsel %vm312, %v1931, %v1933
        %v1937 = vsel %vm312, %v1933, %v1935
        %v1941 = vadd.f32 %v1897, %v1936
        %v1942 = vadd.f32 %v1898, %v1937
        %v1943 = vadd.f32 %v1899, %v1935
        %s1944 = sld [smem:[#allocation6 + $0x13]]
        %v1945 = vstv %s1944
        %v1946 = vmul.f32 %v1945, %v270
        %v1947 = vmul.f32 %v1945, %v266
        %v1948 = vmul.f32 %v1945, %v271
        %1952 = vrot.lane.b32.xlu0 %v1946, 96
        %v1953 = vpop.permute.xlu0 %1952
        %1954 = vrot.lane.b32.xlu0 %v1947, 96
        %v1955 = vpop.permute.xlu0 %1954
        %1956 = vrot.lane.b32.xlu0 %v1948, 96
        %v1957 = vpop.permute.xlu0 %1956
        %v1958 = vsel %vm353, %v1953, %v1955
        %v1959 = vsel %vm353, %v1955, %v1957
        %v1963 = vadd.f32 %v1919, %v1958
        %v1964 = vadd.f32 %v1920, %v1959
        %v1965 = vadd.f32 %v1921, %v1957
        %s1966 = sld [smem:[#allocation6 + $0x44]]
        %v1967 = vstv %s1966
        %v1968 = vmul.f32 %v1967, %v282
        %v1969 = vmul.f32 %v1967, %v278
        %v1970 = vmul.f32 %v1967, %v283
        %1974 = vrot.lane.b32.xlu0 %v1968, 96
        %v1975 = vpop.permute.xlu0 %1974
        %1976 = vrot.lane.b32.xlu0 %v1969, 96
        %v1977 = vpop.permute.xlu0 %1976
        %1978 = vrot.lane.b32.xlu0 %v1970, 96
        %v1979 = vpop.permute.xlu0 %1978
        %v1980 = vsel %vm353, %v1975, %v1977
        %v1981 = vsel %vm353, %v1977, %v1979
        %v1985 = vadd.f32 %v1941, %v1980
        %v1986 = vadd.f32 %v1942, %v1981
        %v1987 = vadd.f32 %v1943, %v1979
        %s1988 = sld [smem:[#allocation6 + $0x1a]]
        %v1989 = vstv %s1988
        %v1990 = vmul.f32 %v1989, %v270
        %v1991 = vmul.f32 %v1989, %v266
        %v1992 = vmul.f32 %v1989, %v271
        %1996 = vrot.lane.b32.xlu0 %v1990, 80
        %v1997 = vpop.permute.xlu0 %1996
        %1998 = vrot.lane.b32.xlu0 %v1991, 80
        %v1999 = vpop.permute.xlu0 %1998
        %2000 = vrot.lane.b32.xlu0 %v1992, 80
        %v2001 = vpop.permute.xlu0 %2000
        %v2002 = vsel %vm394, %v1997, %v1999
        %v2003 = vsel %vm394, %v1999, %v2001
        %v2007 = vadd.f32 %v1963, %v2002
        %v2008 = vadd.f32 %v1964, %v2003
        %v2009 = vadd.f32 %v1965, %v2001
        %s2010 = sld [smem:[#allocation6 + $0x4b]]
        %v2011 = vstv %s2010
        %v2012 = vmul.f32 %v2011, %v282
        %v2013 = vmul.f32 %v2011, %v278
        %v2014 = vmul.f32 %v2011, %v283
        %2018 = vrot.lane.b32.xlu0 %v2012, 80
        %v2019 = vpop.permute.xlu0 %2018
        %2020 = vrot.lane.b32.xlu0 %v2013, 80
        %v2021 = vpop.permute.xlu0 %2020
        %2022 = vrot.lane.b32.xlu0 %v2014, 80
        %v2023 = vpop.permute.xlu0 %2022
        %v2024 = vsel %vm394, %v2019, %v2021
        %v2025 = vsel %vm394, %v2021, %v2023
        %v2029 = vadd.f32 %v1985, %v2024
        %v2030 = vadd.f32 %v1986, %v2025
        %v2031 = vadd.f32 %v1987, %v2023
        %s2032 = sld [smem:[#allocation6 + $0x21]]
        %v2033 = vstv %s2032
        %v2034 = vmul.f32 %v2033, %v270
        %v2035 = vmul.f32 %v2033, %v266
        %v2036 = vmul.f32 %v2033, %v271
        %2040 = vrot.lane.b32.xlu0 %v2034, 64
        %v2041 = vpop.permute.xlu0 %2040
        %2042 = vrot.lane.b32.xlu0 %v2035, 64
        %v2043 = vpop.permute.xlu0 %2042
        %2044 = vrot.lane.b32.xlu0 %v2036, 64
        %v2045 = vpop.permute.xlu0 %2044
        %v2046 = vsel %vm435, %v2041, %v2043
        %v2047 = vsel %vm435, %v2043, %v2045
        %v2051 = vadd.f32 %v2007, %v2046
        %v2052 = vadd.f32 %v2008, %v2047
        %v2053 = vadd.f32 %v2009, %v2045
        %s2054 = sld [smem:[#allocation6 + $0x52]]
        %v2055 = vstv %s2054
        %v2056 = vmul.f32 %v2055, %v282
        %v2057 = vmul.f32 %v2055, %v278
        %v2058 = vmul.f32 %v2055, %v283
        %2062 = vrot.lane.b32.xlu0 %v2056, 64
        %v2063 = vpop.permute.xlu0 %2062
        %2064 = vrot.lane.b32.xlu0 %v2057, 64
        %v2065 = vpop.permute.xlu0 %2064
        %2066 = vrot.lane.b32.xlu0 %v2058, 64
        %v2067 = vpop.permute.xlu0 %2066
        %v2068 = vsel %vm435, %v2063, %v2065
        %v2069 = vsel %vm435, %v2065, %v2067
        %v2073 = vadd.f32 %v2029, %v2068
        %v2074 = vadd.f32 %v2030, %v2069
        %v2075 = vadd.f32 %v2031, %v2067
        %s2076 = sld [smem:[#allocation6 + $0x28]]
        %v2077 = vstv %s2076
        %v2078 = vmul.f32 %v2077, %v270
        %v2079 = vmul.f32 %v2077, %v266
        %v2080 = vmul.f32 %v2077, %v271
        %2084 = vrot.lane.b32.xlu0 %v2078, 48
        %v2085 = vpop.permute.xlu0 %2084
        %2086 = vrot.lane.b32.xlu0 %v2079, 48
        %v2087 = vpop.permute.xlu0 %2086
        %2088 = vrot.lane.b32.xlu0 %v2080, 48
        %v2089 = vpop.permute.xlu0 %2088
        %v2090 = vsel %vm476, %v2085, %v2087
        %v2091 = vsel %vm476, %v2087, %v2089
        %v2095 = vadd.f32 %v2051, %v2090
        %v2096 = vadd.f32 %v2052, %v2091
        %v2097 = vadd.f32 %v2053, %v2089
        %s2098 = sld [smem:[#allocation6 + $0x59]]
        %v2099 = vstv %s2098
        %v2100 = vmul.f32 %v2099, %v282
        %v2101 = vmul.f32 %v2099, %v278
        %v2102 = vmul.f32 %v2099, %v283
        %2106 = vrot.lane.b32.xlu0 %v2100, 48
        %v2107 = vpop.permute.xlu0 %2106
        %2108 = vrot.lane.b32.xlu0 %v2101, 48
        %v2109 = vpop.permute.xlu0 %2108
        %2110 = vrot.lane.b32.xlu0 %v2102, 48
        %v2111 = vpop.permute.xlu0 %2110
        %v2112 = vsel %vm476, %v2107, %v2109
        %v2113 = vsel %vm476, %v2109, %v2111
        %v2117 = vadd.f32 %v2073, %v2112
        %v2118 = vadd.f32 %v2074, %v2113
        %v2119 = vadd.f32 %v2075, %v2111
        %s2120 = sld [smem:[#allocation6 + $0x2f]]
        %v2121 = vstv %s2120
        %v2122 = vmul.f32 %v2121, %v270
        %v2123 = vmul.f32 %v2121, %v266
        %v2124 = vmul.f32 %v2121, %v271
        %2128 = vrot.lane.b32.xlu0 %v2122, 32
        %v2129 = vpop.permute.xlu0 %2128
        %2130 = vrot.lane.b32.xlu0 %v2123, 32
        %v2131 = vpop.permute.xlu0 %2130
        %2132 = vrot.lane.b32.xlu0 %v2124, 32
        %v2133 = vpop.permute.xlu0 %2132
        %v2134 = vsel %vm517, %v2129, %v2131
        %v2135 = vsel %vm517, %v2131, %v2133
        %v2139 = vadd.f32 %v2095, %v2134
        %v2140 = vadd.f32 %v2096, %v2135
        %v2141 = vadd.f32 %v2097, %v2133
        %s2142 = sld [smem:[#allocation6 + $0x60]]
        %v2143 = vstv %s2142
        %v2144 = vmul.f32 %v2143, %v282
        %v2145 = vmul.f32 %v2143, %v278
        %v2146 = vmul.f32 %v2143, %v283
        %2150 = vrot.lane.b32.xlu0 %v2144, 32
        %v2151 = vpop.permute.xlu0 %2150
        %2152 = vrot.lane.b32.xlu0 %v2145, 32
        %v2153 = vpop.permute.xlu0 %2152
        %2154 = vrot.lane.b32.xlu0 %v2146, 32
        %v2155 = vpop.permute.xlu0 %2154
        %v2156 = vsel %vm517, %v2151, %v2153
        %v2157 = vsel %vm517, %v2153, %v2155
        %v2161 = vadd.f32 %v2117, %v2156
        %v2162 = vadd.f32 %v2118, %v2157
        %v2163 = vadd.f32 %v2119, %v2155
        %v2167 = vrot.slane %v2139, 3
        %v2168 = vrot.slane %v2140, 3
        %v2169 = vrot.slane %v2141, 3
        %2170 = vrot.lane.b32.xlu0 %v2167, 123
        %v2171 = vpop.permute.xlu0 %2170
        %2172 = vrot.lane.b32.xlu0 %v2168, 123
        %v2173 = vpop.permute.xlu0 %2172
        %2174 = vrot.lane.b32.xlu0 %v2169, 123
        %v2175 = vpop.permute.xlu0 %2174
        %vm2176 = vcmask 1006592
        %v2177 = vsel %vm2176, %v2171, %v2173
        %v2178 = vsel %vm2176, %v2173, %v2175
        %v2181 = vmul.f32 %v284, %v2177
        %v2182 = vmul.f32 %v285, %v2178
        %v2185 = vrot.slane %v2181, 5
        %v2186 = vrot.slane %v2182, 5
        %v2189 = vadd.f32 %v1856, %v2185
        %v2190 = vadd.f32 %v1857, %v2186
        %v2194 = vrot.slane %v2161, 3
        %v2195 = vrot.slane %v2162, 3
        %v2196 = vrot.slane %v2163, 3
        %2197 = vrot.lane.b32.xlu0 %v2194, 123
        %v2198 = vpop.permute.xlu0 %2197
        %2199 = vrot.lane.b32.xlu0 %v2195, 123
        %v2200 = vpop.permute.xlu0 %2199
        %2201 = vrot.lane.b32.xlu0 %v2196, 123
        %v2202 = vpop.permute.xlu0 %2201
        %v2203 = vsel %vm2176, %v2198, %v2200
        %v2204 = vsel %vm2176, %v2200, %v2202
        %v2207 = vmul.f32 %v284, %v2203
        %v2208 = vmul.f32 %v285, %v2204
        %v2211 = vrot.slane %v2207, 5
        %v2212 = vrot.slane %v2208, 5
        %v2215 = vadd.f32 %v1882, %v2211
        %v2216 = vadd.f32 %v1883, %v2212
        %s2217 = sld [smem:[#allocation6 + $0x6]]
        %v2218 = vstv %s2217
        %v2219 = vmul.f32 %v2218, %v270
        %v2220 = vmul.f32 %v2218, %v266
        %v2221 = vmul.f32 %v2218, %v271
        %v2222 = vadd.f32 %v2219, 0.0
        %v2223 = vadd.f32 %v2220, 0.0
        %v2224 = vadd.f32 %v2221, 0.0
        %s2225 = sld [smem:[#allocation6 + $0x37]]
        %v2226 = vstv %s2225
        %v2227 = vmul.f32 %v2226, %v282
        %v2228 = vmul.f32 %v2226, %v278
        %v2229 = vmul.f32 %v2226, %v283
        %v2230 = vadd.f32 %v2227, 0.0
        %v2231 = vadd.f32 %v2228, 0.0
        %v2232 = vadd.f32 %v2229, 0.0
        %s2233 = sld [smem:[#allocation6 + $0xd]]
        %v2234 = vstv %s2233
        %v2235 = vmul.f32 %v2234, %v270
        %v2236 = vmul.f32 %v2234, %v266
        %v2237 = vmul.f32 %v2234, %v271
        %2241 = vrot.lane.b32.xlu0 %v2235, 112
        %v2242 = vpop.permute.xlu0 %2241
        %2243 = vrot.lane.b32.xlu0 %v2236, 112
        %v2244 = vpop.permute.xlu0 %2243
        %2245 = vrot.lane.b32.xlu0 %v2237, 112
        %v2246 = vpop.permute.xlu0 %2245
        %v2247 = vsel %vm312, %v2242, %v2244
        %v2248 = vsel %vm312, %v2244, %v2246
        %v2252 = vadd.f32 %v2222, %v2247
        %v2253 = vadd.f32 %v2223, %v2248
        %v2254 = vadd.f32 %v2224, %v2246
        %s2255 = sld [smem:[#allocation6 + $0x3e]]
        %v2256 = vstv %s2255
        %v2257 = vmul.f32 %v2256, %v282
        %v2258 = vmul.f32 %v2256, %v278
        %v2259 = vmul.f32 %v2256, %v283
        %2263 = vrot.lane.b32.xlu0 %v2257, 112
        %v2264 = vpop.permute.xlu0 %2263
        %2265 = vrot.lane.b32.xlu0 %v2258, 112
        %v2266 = vpop.permute.xlu0 %2265
        %2267 = vrot.lane.b32.xlu0 %v2259, 112
        %v2268 = vpop.permute.xlu0 %2267
        %v2269 = vsel %vm312, %v2264, %v2266
        %v2270 = vsel %vm312, %v2266, %v2268
        %v2274 = vadd.f32 %v2230, %v2269
        %v2275 = vadd.f32 %v2231, %v2270
        %v2276 = vadd.f32 %v2232, %v2268
        %s2277 = sld [smem:[#allocation6 + $0x14]]
        %v2278 = vstv %s2277
        %v2279 = vmul.f32 %v2278, %v270
        %v2280 = vmul.f32 %v2278, %v266
        %v2281 = vmul.f32 %v2278, %v271
        %2285 = vrot.lane.b32.xlu0 %v2279, 96
        %v2286 = vpop.permute.xlu0 %2285
        %2287 = vrot.lane.b32.xlu0 %v2280, 96
        %v2288 = vpop.permute.xlu0 %2287
        %2289 = vrot.lane.b32.xlu0 %v2281, 96
        %v2290 = vpop.permute.xlu0 %2289
        %v2291 = vsel %vm353, %v2286, %v2288
        %v2292 = vsel %vm353, %v2288, %v2290
        %v2296 = vadd.f32 %v2252, %v2291
        %v2297 = vadd.f32 %v2253, %v2292
        %v2298 = vadd.f32 %v2254, %v2290
        %s2299 = sld [smem:[#allocation6 + $0x45]]
        %v2300 = vstv %s2299
        %v2301 = vmul.f32 %v2300, %v282
        %v2302 = vmul.f32 %v2300, %v278
        %v2303 = vmul.f32 %v2300, %v283
        %2307 = vrot.lane.b32.xlu0 %v2301, 96
        %v2308 = vpop.permute.xlu0 %2307
        %2309 = vrot.lane.b32.xlu0 %v2302, 96
        %v2310 = vpop.permute.xlu0 %2309
        %2311 = vrot.lane.b32.xlu0 %v2303, 96
        %v2312 = vpop.permute.xlu0 %2311
        %v2313 = vsel %vm353, %v2308, %v2310
        %v2314 = vsel %vm353, %v2310, %v2312
        %v2318 = vadd.f32 %v2274, %v2313
        %v2319 = vadd.f32 %v2275, %v2314
        %v2320 = vadd.f32 %v2276, %v2312
        %s2321 = sld [smem:[#allocation6 + $0x1b]]
        %v2322 = vstv %s2321
        %v2323 = vmul.f32 %v2322, %v270
        %v2324 = vmul.f32 %v2322, %v266
        %v2325 = vmul.f32 %v2322, %v271
        %2329 = vrot.lane.b32.xlu0 %v2323, 80
        %v2330 = vpop.permute.xlu0 %2329
        %2331 = vrot.lane.b32.xlu0 %v2324, 80
        %v2332 = vpop.permute.xlu0 %2331
        %2333 = vrot.lane.b32.xlu0 %v2325, 80
        %v2334 = vpop.permute.xlu0 %2333
        %v2335 = vsel %vm394, %v2330, %v2332
        %v2336 = vsel %vm394, %v2332, %v2334
        %v2340 = vadd.f32 %v2296, %v2335
        %v2341 = vadd.f32 %v2297, %v2336
        %v2342 = vadd.f32 %v2298, %v2334
        %s2343 = sld [smem:[#allocation6 + $0x4c]]
        %v2344 = vstv %s2343
        %v2345 = vmul.f32 %v2344, %v282
        %v2346 = vmul.f32 %v2344, %v278
        %v2347 = vmul.f32 %v2344, %v283
        %2351 = vrot.lane.b32.xlu0 %v2345, 80
        %v2352 = vpop.permute.xlu0 %2351
        %2353 = vrot.lane.b32.xlu0 %v2346, 80
        %v2354 = vpop.permute.xlu0 %2353
        %2355 = vrot.lane.b32.xlu0 %v2347, 80
        %v2356 = vpop.permute.xlu0 %2355
        %v2357 = vsel %vm394, %v2352, %v2354
        %v2358 = vsel %vm394, %v2354, %v2356
        %v2362 = vadd.f32 %v2318, %v2357
        %v2363 = vadd.f32 %v2319, %v2358
        %v2364 = vadd.f32 %v2320, %v2356
        %s2365 = sld [smem:[#allocation6 + $0x22]]
        %v2366 = vstv %s2365
        %v2367 = vmul.f32 %v2366, %v270
        %v2368 = vmul.f32 %v2366, %v266
        %v2369 = vmul.f32 %v2366, %v271
        %2373 = vrot.lane.b32.xlu0 %v2367, 64
        %v2374 = vpop.permute.xlu0 %2373
        %2375 = vrot.lane.b32.xlu0 %v2368, 64
        %v2376 = vpop.permute.xlu0 %2375
        %2377 = vrot.lane.b32.xlu0 %v2369, 64
        %v2378 = vpop.permute.xlu0 %2377
        %v2379 = vsel %vm435, %v2374, %v2376
        %v2380 = vsel %vm435, %v2376, %v2378
        %v2384 = vadd.f32 %v2340, %v2379
        %v2385 = vadd.f32 %v2341, %v2380
        %v2386 = vadd.f32 %v2342, %v2378
        %s2387 = sld [smem:[#allocation6 + $0x53]]
        %v2388 = vstv %s2387
        %v2389 = vmul.f32 %v2388, %v282
        %v2390 = vmul.f32 %v2388, %v278
        %v2391 = vmul.f32 %v2388, %v283
        %2395 = vrot.lane.b32.xlu0 %v2389, 64
        %v2396 = vpop.permute.xlu0 %2395
        %2397 = vrot.lane.b32.xlu0 %v2390, 64
        %v2398 = vpop.permute.xlu0 %2397
        %2399 = vrot.lane.b32.xlu0 %v2391, 64
        %v2400 = vpop.permute.xlu0 %2399
        %v2401 = vsel %vm435, %v2396, %v2398
        %v2402 = vsel %vm435, %v2398, %v2400
        %v2406 = vadd.f32 %v2362, %v2401
        %v2407 = vadd.f32 %v2363, %v2402
        %v2408 = vadd.f32 %v2364, %v2400
        %s2409 = sld [smem:[#allocation6 + $0x29]]
        %v2410 = vstv %s2409
        %v2411 = vmul.f32 %v2410, %v270
        %v2412 = vmul.f32 %v2410, %v266
        %v2413 = vmul.f32 %v2410, %v271
        %2417 = vrot.lane.b32.xlu0 %v2411, 48
        %v2418 = vpop.permute.xlu0 %2417
        %2419 = vrot.lane.b32.xlu0 %v2412, 48
        %v2420 = vpop.permute.xlu0 %2419
        %2421 = vrot.lane.b32.xlu0 %v2413, 48
        %v2422 = vpop.permute.xlu0 %2421
        %v2423 = vsel %vm476, %v2418, %v2420
        %v2424 = vsel %vm476, %v2420, %v2422
        %v2428 = vadd.f32 %v2384, %v2423
        %v2429 = vadd.f32 %v2385, %v2424
        %v2430 = vadd.f32 %v2386, %v2422
        %s2431 = sld [smem:[#allocation6 + $0x5a]]
        %v2432 = vstv %s2431
        %v2433 = vmul.f32 %v2432, %v282
        %v2434 = vmul.f32 %v2432, %v278
        %v2435 = vmul.f32 %v2432, %v283
        %2439 = vrot.lane.b32.xlu0 %v2433, 48
        %v2440 = vpop.permute.xlu0 %2439
        %2441 = vrot.lane.b32.xlu0 %v2434, 48
        %v2442 = vpop.permute.xlu0 %2441
        %2443 = vrot.lane.b32.xlu0 %v2435, 48
        %v2444 = vpop.permute.xlu0 %2443
        %v2445 = vsel %vm476, %v2440, %v2442
        %v2446 = vsel %vm476, %v2442, %v2444
        %v2450 = vadd.f32 %v2406, %v2445
        %v2451 = vadd.f32 %v2407, %v2446
        %v2452 = vadd.f32 %v2408, %v2444
        %s2453 = sld [smem:[#allocation6 + $0x30]]
        %v2454 = vstv %s2453
        %v2455 = vmul.f32 %v2454, %v270
        %v2456 = vmul.f32 %v2454, %v266
        %v2457 = vmul.f32 %v2454, %v271
        %2461 = vrot.lane.b32.xlu0 %v2455, 32
        %v2462 = vpop.permute.xlu0 %2461
        %2463 = vrot.lane.b32.xlu0 %v2456, 32
        %v2464 = vpop.permute.xlu0 %2463
        %2465 = vrot.lane.b32.xlu0 %v2457, 32
        %v2466 = vpop.permute.xlu0 %2465
        %v2467 = vsel %vm517, %v2462, %v2464
        %v2468 = vsel %vm517, %v2464, %v2466
        %v2472 = vadd.f32 %v2428, %v2467
        %v2473 = vadd.f32 %v2429, %v2468
        %v2474 = vadd.f32 %v2430, %v2466
        %s2475 = sld [smem:[#allocation6 + $0x61]]
        %v2476 = vstv %s2475
        %v2477 = vmul.f32 %v2476, %v282
        %v2478 = vmul.f32 %v2476, %v278
        %v2479 = vmul.f32 %v2476, %v283
        %2483 = vrot.lane.b32.xlu0 %v2477, 32
        %v2484 = vpop.permute.xlu0 %2483
        %2485 = vrot.lane.b32.xlu0 %v2478, 32
        %v2486 = vpop.permute.xlu0 %2485
        %2487 = vrot.lane.b32.xlu0 %v2479, 32
        %v2488 = vpop.permute.xlu0 %2487
        %v2489 = vsel %vm517, %v2484, %v2486
        %v2490 = vsel %vm517, %v2486, %v2488
        %v2494 = vadd.f32 %v2450, %v2489
        %v2495 = vadd.f32 %v2451, %v2490
        %v2496 = vadd.f32 %v2452, %v2488
        %v2500 = vrot.slane %v2472, 2
        %v2501 = vrot.slane %v2473, 2
        %v2502 = vrot.slane %v2474, 2
        %2503 = vrot.lane.b32.xlu0 %v2500, 122
        %v2504 = vpop.permute.xlu0 %2503
        %2505 = vrot.lane.b32.xlu0 %v2501, 122
        %v2506 = vpop.permute.xlu0 %2505
        %2507 = vrot.lane.b32.xlu0 %v2502, 122
        %v2508 = vpop.permute.xlu0 %2507
        %vm2509 = vcmask 998400
        %v2510 = vsel %vm2509, %v2504, %v2506
        %v2511 = vsel %vm2509, %v2506, %v2508
        %v2514 = vmul.f32 %v284, %v2510
        %v2515 = vmul.f32 %v285, %v2511
        %v2518 = vrot.slane %v2514, 6
        %v2519 = vrot.slane %v2515, 6
        %v2522 = vadd.f32 %v2189, %v2518
        %v2523 = vadd.f32 %v2190, %v2519
        %v2527 = vrot.slane %v2494, 2
        %v2528 = vrot.slane %v2495, 2
        %v2529 = vrot.slane %v2496, 2
        %2530 = vrot.lane.b32.xlu0 %v2527, 122
        %v2531 = vpop.permute.xlu0 %2530
        %2532 = vrot.lane.b32.xlu0 %v2528, 122
        %v2533 = vpop.permute.xlu0 %2532
        %2534 = vrot.lane.b32.xlu0 %v2529, 122
        %v2535 = vpop.permute.xlu0 %2534
        %v2536 = vsel %vm2509, %v2531, %v2533
        %v2537 = vsel %vm2509, %v2533, %v2535
        %v2540 = vmul.f32 %v284, %v2536
        %v2541 = vmul.f32 %v285, %v2537
        %v2544 = vrot.slane %v2540, 6
        %v2545 = vrot.slane %v2541, 6
        %v2548 = vadd.f32 %v2215, %v2544
        %v2549 = vadd.f32 %v2216, %v2545
        %v2550 = vadd.f32 %v2522, %v2548
        %v2551 = vadd.f32 %v2523, %v2549
        %v2552 = vxor.u32 %v2550, 2147483648
        %v2553 = vxor.u32 %v2551, 2147483648
        %v2554 = vmul.f32 %v2552, 1.442695
        %v2555 = vpow.pop %v2554
        %v2556 = vmul.f32 %v2553, 1.442695
        %v2557 = vpow.pop %v2556
        %v2558 = vadd.f32 %v2555, 1.0
        %v2559 = vadd.f32 %v2557, 1.0
        %v2560 = vrcp.pop %v2558
        %v2561 = vmul.f32 %v2558, %v2560
        %v2562 = vsub.f32 1.0, %v2561
        %v2563 = vmul.f32 %v2560, %v2562
        %v2564 = vadd.f32 %v2560, %v2563
        %vm2565 = vweird.f32 %v2558
        %vm2566 = vweird.f32 %v2560
        %vm2567 = vmor %vm2565, %vm2566
        %v2568 = vsel %vm2567, %v2560, %v2564
        %v2569 = vand.u32 2147483647, %v2558
        %vm2570 = vcmp.eq.f32.partialorder %v2569, 8.507059e+37
        %v2571 = vand.u32 %v2558, 2147483648
        %v2572 = vor.u32 1.1754944e-38, %v2571
        %v2573 = vsel %vm2570, %v2572, %v2568
        %v2574 = vmul.f32 1.0, %v2573
        %v2575 = vrcp.pop %v2559
        %v2576 = vmul.f32 %v2559, %v2575
        %v2577 = vsub.f32 1.0, %v2576
        %v2578 = vmul.f32 %v2575, %v2577
        %v2579 = vadd.f32 %v2575, %v2578
        %vm2580 = vweird.f32 %v2559
        %vm2581 = vweird.f32 %v2575
        %vm2582 = vmor %vm2580, %vm2581
        %v2583 = vsel %vm2582, %v2575, %v2579
        %v2584 = vand.u32 2147483647, %v2559
        %vm2585 = vcmp.eq.f32.partialorder %v2584, 8.507059e+37
        %v2586 = vand.u32 %v2559, 2147483648
        %v2587 = vor.u32 1.1754944e-38, %v2586
        %v2588 = vsel %vm2585, %v2587, %v2583
        %v2589 = vmul.f32 1.0, %v2588
        %v2592 = vrot.slane %v2589, 7
        %vm2593 = vcmask 1040384
        %v2594 = vsel %vm2593, %v2574, %v2592
        %v2596 = vlaneseq
        %vm2597 = vcmp.ge.s32.totalorder %v2596, 0
        %vm2598 = vcmp.lt.s32.totalorder %v2596, 256
        %vm2599 = vmand %vm2597, %vm2598
        %2600 = vst.msk [vmem:[%s217] sm:$0x3] %vm2599, %v2594
        %s2601 = sand.u32 %s98, 1
        %s2602 = scalar_lea.sflag [#allocation4], %s2601
        %s2603 = sand.u32 %s98, 1
        %s2604 = smul.addr %s2603, 2
        %s2605 = scalar_lea.vmem [#allocation9], %s2604
        // Predicated region
        $region45: #{tpu_custom_call.1} parent=31 // pred_check
          %p2606 = pneg %p108
        $region46: #{tpu_custom_call.1} parent=31 // pred_check_branch
          %2608 = sbr.rel (%p2606) target = $region48
        $region47: #{tpu_custom_call.1} parent=31 // pred_region
          %2610 = vsyncadd %s2602, 0
          %s2611 = smul.addr %s22, 2
          %s2612 = scalar_lea.hbm %s3, %s2611
          %s2614 = sshll.u32 %s2605, 4
          %s2615 = int_to_ptr.vmem [resolvable:$true] %s2614
          %s2616 = sshll.u32 %s2612, 4
          %s2617 = int_to_ptr.hbm [resolvable:$true] %s2616
          %2619 = dma.vmem_to_hbm [thread:$0]  %s2615, 32, %s2617, %s2602
        $region48: #{tpu_custom_call.1} parent=31 // pred_fallthru
          _
      $region32: #{tpu_custom_call.1} parent=5 // pred_fallthru
        _
      %p2620 = scmp.le.s32.totalorder 2, %s17
      // Predicated region
      $region49: #{tpu_custom_call.1} parent=5 // pred_check
        %p2621 = pneg %p2620
      $region50: #{tpu_custom_call.1} parent=5 // pred_check_branch
        %2623 = sbr.rel (%p2621) target = $region52
      $region51: #{tpu_custom_call.1} parent=5 // pred_region
        %s2624 = ssub.s32 %s17, 2
        // Predicated region
        $region53: #{tpu_custom_call.1} parent=51 // pred_check
          %p2625 = pneg %p114
        $region54: #{tpu_custom_call.1} parent=51 // pred_check_branch
          %2627 = sbr.rel (%p2625) target = $region56
        $region55: #{tpu_custom_call.1} parent=51 // pred_region
          %s2628 = sand.u32 %s99, 1
          %s2629 = scalar_lea.sflag [#allocation4], %s2628
          %s2630 = sand.u32 %s99, 1
          %s2631 = smul.addr %s2630, 2
          %s2632 = scalar_lea.vmem [#allocation9], %s2631
          %2634 = dma.done %s2629, 32
        $region56: #{tpu_custom_call.1} parent=51 // pred_fallthru
          _
      $region52: #{tpu_custom_call.1} parent=5 // pred_fallthru
        _
    $region6: #{tpu_custom_call.1} parent=1 // loop_footer
      %s21 = sadd.s32 1, %s17
    $region7: #{tpu_custom_call.1} parent=1 // loop_footer_branch
      %16 = sbr.rel target = $region3
    $region8: #{tpu_custom_call.1} parent=1 // loop_exit
      _
    %2635 = vsyncpa [#allocation3], 1
    %s2636 = scalar_lea.sflag [#allocation3], 1
    %2637 = vsyncpa %s2636, 1
    %2638 = vsyncpa [#allocation8], 1
    %2639 = vsyncpa [#allocation4], 1
    %s2640 = scalar_lea.sflag [#allocation4], 1
    %2641 = vsyncpa %s2640, 1
    %2642 = vsyncpa [#allocation5], 1
    %s2643 = scalar_lea.sflag [#allocation5], 1
    %2644 = vsyncpa %s2643, 1

</llo_original>
